<compile_context>
chip_gen: v7x
topology: tpu7x:2x2x1
jax: 0.10.0
libtpu: 0.0.40
codegen_flags: <defaults>
</compile_context>

<pallas_src>
import functools

import numpy as np
import jax
import jax.numpy as jnp
from jax import lax
from jax.experimental import pallas as pl
from jax.experimental.pallas import tpu as pltpu

BLOCKSIZE = 8                        # c.blocksize_dct
CHANNEL_DCT = BLOCKSIZE * BLOCKSIZE  # c.channel_dct


def make_dct_matrix(bs: int) -> np.ndarray:
    """Orthonormal DCT-II matrix (same as the Haar-like matrix in Dct2d.__init__)."""
    A = np.zeros((bs, bs), dtype=np.float64)
    for i in range(bs):
        c_i = 1.0 / np.sqrt(2.0) if i == 0 else 1.0
        for n in range(bs):
            A[i, n] = np.sqrt(2.0 / bs) * c_i * np.cos((2 * n + 1) / (bs * 2) * i * np.pi)
    return A.astype(np.float32)


def _make_left_operator(A: np.ndarray, TH: int) -> np.ndarray:
    """L1[k*th + r, r*bs + n] = A[k, n]  ->  (L1 @ x)[k*th+r, j] = sum_n A[k,n] x[r*bs+n, j]."""
    bs = A.shape[0]
    th = TH // bs
    L1 = np.zeros((TH, TH), dtype=np.float32)
    for k in range(bs):
        for r in range(th):
            L1[k * th + r, r * bs:(r + 1) * bs] = A[k]
    return L1


def _make_right_operator(A: np.ndarray, TW: int) -> np.ndarray:
    """R2[wb*bs + m, l*wbt + wb] = A[l, m]  ->  (t @ R2)[:, l*wbt+wb] = sum_m t[:, wb*bs+m] A[l,m]."""
    bs = A.shape[0]
    wbt = TW // bs
    R2 = np.zeros((TW, TW), dtype=np.float32)
    for l in range(bs):
        for wb in range(wbt):
            R2[wb * bs:(wb + 1) * bs, l * wbt + wb] = A[l]
    return R2


def _dct2d_kernel(x_ref, l1_ref, r2_ref, o_ref, *, bs, th, wbt, n_chunks, bn):
    # x_ref : (Bn, TH, W)           input row strips
    # l1_ref: (TH, TH)              left operator (VMEM-resident, constant index_map)
    # r2_ref: (TW, TW)              right operator (VMEM-resident)
    # o_ref : (Bn, bs, bs, th, Wb)  final channel-layout output block (full width)
    tw = wbt * bs
    th_aligned = (th % 8 == 0)  # sublane-aligned (k, r) split of `res` rows

    def process_chunk(b, col, ocol):
        xc = x_ref[b, :, pl.ds(col, tw)]                                  # (TH, TW)
        # Operators are re-loaded per dot (review: do not hold 64 vregs live).
        t = jnp.dot(l1_ref[...], xc, preferred_element_type=jnp.float32)   # rows -> (k, r)
        res = jnp.dot(t, r2_ref[...], preferred_element_type=jnp.float32)  # cols -> (l, wb)
        if th_aligned:
            # 8 stores per chunk: only the lane-granularity (l) split is done per-store;
            # the (k) split is a free sublane-aligned reshape.
            for l in range(bs):
                o_ref[b, :, l, :, pl.ds(ocol, wbt)] = (
                    res[:, l * wbt:(l + 1) * wbt].reshape(bs, th, wbt))
        else:
            # Tiny TH==H fallback (th not a multiple of 8): per-(k, l) stores.
            for k in range(bs):
                for l in range(bs):
                    o_ref[b, k, l, :, pl.ds(ocol, wbt)] = (
                        res[k * th:(k + 1) * th, l * wbt:(l + 1) * wbt])

    for b in range(bn):  # Bn is small (1, 2 or 4): static loop over images in the block
        if n_chunks <= 4:
            for c in range(n_chunks):
                process_chunk(b, c * tw, c * wbt)
        else:
            def body(c, carry):
                process_chunk(b,
                              pl.multiple_of(c * tw, tw),
                              pl.multiple_of(c * wbt, wbt))
                return carry
            lax.fori_loop(0, n_chunks, body, 0)


def _pick_tiles(H: int, W: int, bs: int):
    """Generation-aware TH / TW selection (see review notes)."""
    kind = ""
    try:
        kind = jax.devices()[0].device_kind.lower()
    except Exception:
        pass
    is_v6 = "v6" in kind  # v6e: memory-bound regime, bigger tiles pay off

    # TH must be a multiple of 8*bs (so th = TH/bs is sublane-aligned) or equal H.
    th_prefs = (256, 128, 64) if is_v6 else (64,)
    TH = None
    for cand in th_prefs:
        if cand % (8 * bs) == 0 and H % cand == 0:
            TH = cand
            break
    if TH is None:
        TH = H  # th == Hb: legal block spec (full-extent last-but-one dim)

    # TW: prefer lane-aligned chunks; never fall back to a huge (W, W) operator.
    tw_prefs = (256, 128) if is_v6 else (128, 256)
    TW = None
    for cand in tw_prefs:
        if W % cand == 0:
            TW = cand
            break
    if TW is None:
        if W <= 512:
            TW = W
        else:
            TW = bs
            d = bs
            while d <= 256:
                if W % d == 0:
                    TW = d
                d += bs
    return TH, TW


def dct2d_forward(x: jax.Array, blocksize: int = BLOCKSIZE) -> jax.Array:
    """x: (N, 1, H, W) float32 -> (N, blocksize**2, H//bs, W//bs) float32."""
    N, C, H, W = x.shape
    assert C == 1, "DCT is only implemented for a single channel"
    bs = blocksize
    assert H % bs == 0 and W % bs == 0, "dims must be divisible by the blocksize"
    Hb, Wb = H // bs, W // bs

    TH, TW = _pick_tiles(H, W, bs)

    # Block the N axis when per-strip work is small (amortize ~0.35 us/step overhead).
    strip_bytes = TH * W * 4
    if strip_bytes <= 512 * 1024:
        if N % 4 == 0:
            Bn = 4
        elif N % 2 == 0:
            Bn = 2
        else:
            Bn = 1
    else:
        Bn = 1
    # Keep grid product >= 2 so both TensorCores (v7x) get work and pipelining stays on.
    while Bn > 1 and (N // Bn) * (H // TH) < 2:
        Bn //= 2
    if (N // Bn) * (H // TH) < 2:
        half = TH // 2
        if half >= 8 * bs and half % (8 * bs) == 0 and H % half == 0:
            TH = half

    th = TH // bs
    wbt = TW // bs
    n_chunks = W // TW

    A = make_dct_matrix(bs)
    L1 = jnp.asarray(_make_left_operator(A, TH))    # (TH, TH) host constant
    R2 = jnp.asarray(_make_right_operator(A, TW))   # (TW, TW) host constant

    x2 = x[:, 0, :, :].astype(jnp.float32)          # (N, H, W)

    kernel = functools.partial(_dct2d_kernel, bs=bs, th=th, wbt=wbt,
                               n_chunks=n_chunks, bn=Bn)

    # VMEM budget: input + output double-buffered blocks + resident operators + slack.
    est_vmem = (2 * Bn * TH * W * 4) + (2 * Bn * bs * bs * th * Wb * 4) \
        + (TH * TH + TW * TW) * 4 + 4 * TH * TW * 4
    vmem_limit = None
    if est_vmem > 30 * 1024 * 1024:
        vmem_limit = min(est_vmem + (8 << 20), 64 << 20)

    cost = pl.CostEstimate(
        flops=2 * N * H * W * (TH + TW),
        transcendentals=0,
        bytes_accessed=8 * N * H * W,
    )

    out5 = pl.pallas_call(
        kernel,
        out_shape=jax.ShapeDtypeStruct((N, bs, bs, Hb, Wb), jnp.float32),
        grid_spec=pltpu.PrefetchScalarGridSpec(
            num_scalar_prefetch=0,
            grid=(N // Bn, H // TH),
            in_specs=[
                pl.BlockSpec((Bn, TH, W), lambda n, i: (n, i, 0)),
                pl.BlockSpec((TH, TH), lambda n, i: (0, 0)),   # resident operator
                pl.BlockSpec((TW, TW), lambda n, i: (0, 0)),   # resident operator
            ],
            out_specs=pl.BlockSpec((Bn, bs, bs, th, Wb),
                                   lambda n, i: (n, 0, 0, i, 0)),
        ),
        compiler_params=pltpu.CompilerParams(
            dimension_semantics=("parallel", "parallel"),
            vmem_limit_bytes=vmem_limit),
        cost_estimate=cost,
    )(x2, L1, R2)

    # (N, 8, 8, Hb, Wb) -> (N, 64, Hb, Wb): contiguous reshape, no data movement.
    return out5.reshape(N, bs * bs, Hb, Wb)


# TODO(synk): Dct2d.inverse and the interleaving=True (overlapping blocks) path are not
# implemented; only the forward pass (stride == blocksize) is translated.


def _reference_dct2d(x: np.ndarray, bs: int) -> np.ndarray:
    """Pure-numpy reference matching the PyTorch forward (per-block A @ B @ A^T)."""
    A = make_dct_matrix(bs)
    N, _, H, W = x.shape
    xb = x[:, 0].reshape(N, H // bs, bs, W // bs, bs).transpose(0, 1, 3, 2, 4)
    coeff = np.einsum("kn,NRCnm,lm->NRCkl", A, xb, A)
    return coeff.transpose(0, 3, 4, 1, 2).reshape(N, bs * bs, H // bs, W // bs)


if __name__ == "__main__":
    key = jax.random.PRNGKey(0)
    k1, k2 = jax.random.split(key)

    # Small shape consistent with the module: (N, 1, H, W) = (2, 1, 16, 16).
    x_small = jax.random.normal(k1, (2, 1, 16, 16), dtype=jnp.float32)
    out_small = jax.block_until_ready(dct2d_forward(x_small, BLOCKSIZE))
    ref_small = _reference_dct2d(np.asarray(x_small), BLOCKSIZE)
    assert out_small.shape == (2, CHANNEL_DCT, 2, 2), out_small.shape
    assert np.allclose(np.asarray(out_small), ref_small, atol=1e-4, rtol=1e-4)

    # Also exercise the tiled path (row strips + multiple column chunks + collapsed stores).
    x_tiled = jax.random.normal(k2, (1, 1, 128, 512), dtype=jnp.float32)
    out_tiled = jax.block_until_ready(dct2d_forward(x_tiled, BLOCKSIZE))
    ref_tiled = _reference_dct2d(np.asarray(x_tiled), BLOCKSIZE)
    assert out_tiled.shape == (1, CHANNEL_DCT, 16, 64), out_tiled.shape
    assert np.allclose(np.asarray(out_tiled), ref_tiled, atol=1e-4, rtol=1e-4)

    print("KERNEL_OK")
</pallas_src>

<mosaic_0001>
module attributes {stable_mosaic.version = 11 : i64} {
  func.func @_dct2d_kernel(%arg0: i32, %arg1: i32, %arg2: memref<1x16x16xf32, #tpu.memory_space<vmem>>, %arg3: memref<16x16xf32, #tpu.memory_space<vmem>>, %arg4: memref<16x16xf32, #tpu.memory_space<vmem>>, %arg5: memref<1x8x8x2x2xf32, #tpu.memory_space<vmem>>) attributes {dimension_semantics = [#tpu.dimension_semantics<parallel>, #tpu.dimension_semantics<parallel>], iteration_bounds = array<i64: 2, 1>, scalar_prefetch = 0 : i64, scratch_operands = 0 : i64, tpu.core_type = #tpu.core_type<tc>, window_params = [{transform_indices = @transform_0, window_bounds = array<i64: 1, 16, 16>}, {pipeline_mode = #tpu.pipeline_mode<synchronous>, transform_indices = @transform_1, window_bounds = array<i64: 16, 16>}, {pipeline_mode = #tpu.pipeline_mode<synchronous>, transform_indices = @transform_2, window_bounds = array<i64: 16, 16>}, {transform_indices = @transform_3, window_bounds = array<i64: 1, 8, 8, 2, 2>}]} {
    %c0 = arith.constant 0 : index
    %c0_0 = arith.constant 0 : index
    %c0_1 = arith.constant 0 : index
    %0 = vector.load %arg2[%c0, %c0_0, %c0_1] : memref<1x16x16xf32, #tpu.memory_space<vmem>>, vector<1x16x16xf32>
    %1 = vector.shape_cast %0 : vector<1x16x16xf32> to vector<16x16xf32>
    %c0_2 = arith.constant 0 : index
    %c0_3 = arith.constant 0 : index
    %2 = vector.load %arg3[%c0_2, %c0_3] : memref<16x16xf32, #tpu.memory_space<vmem>>, vector<16x16xf32>
    %cst = arith.constant dense<0.000000e+00> : vector<16x16xf32>
    %3 = tpu.matmul %2, %1, %cst {dimension_numbers = #tpu.dot_dimension_numbers<[1], [0], [0], [1], [0, 0, 1, 1], [], []>} : vector<16x16xf32>, vector<16x16xf32>, vector<16x16xf32> -> vector<16x16xf32>
    %c0_4 = arith.constant 0 : index
    %c0_5 = arith.constant 0 : index
    %4 = vector.load %arg4[%c0_4, %c0_5] : memref<16x16xf32, #tpu.memory_space<vmem>>, vector<16x16xf32>
    %cst_6 = arith.constant dense<0.000000e+00> : vector<16x16xf32>
    %5 = tpu.matmul %3, %4, %cst_6 {dimension_numbers = #tpu.dot_dimension_numbers<[1], [0], [0], [1], [0, 0, 1, 1], [], []>} : vector<16x16xf32>, vector<16x16xf32>, vector<16x16xf32> -> vector<16x16xf32>
    %6 = vector.extract_strided_slice %5 {offsets = [0, 0], sizes = [2, 2], strides = [1, 1]} : vector<16x16xf32> to vector<2x2xf32>
    %c0_7 = arith.constant 0 : index
    %c0_8 = arith.constant 0 : index
    %c0_9 = arith.constant 0 : index
    %c0_10 = arith.constant 0 : index
    %c0_11 = arith.constant 0 : index
    %7 = vector.load %arg5[%c0_7, %c0_8, %c0_9, %c0_10, %c0_11] : memref<1x8x8x2x2xf32, #tpu.memory_space<vmem>>, vector<1x1x1x2x2xf32>
    %8 = vector.shape_cast %7 : vector<1x1x1x2x2xf32> to vector<2x2xf32>
    %9 = vector.shape_cast %6 : vector<2x2xf32> to vector<1x1x1x2x2xf32>
    tpu.vector_store %arg5[%c0_7, %c0_8, %c0_9, %c0_10, %c0_11], %9 {strides = array<i32>} : memref<1x8x8x2x2xf32, #tpu.memory_space<vmem>>, vector<1x1x1x2x2xf32>,
    %10 = vector.extract_strided_slice %5 {offsets = [0, 2], sizes = [2, 2], strides = [1, 1]} : vector<16x16xf32> to vector<2x2xf32>
    %c0_12 = arith.constant 0 : index
    %c0_13 = arith.constant 0 : index
    %c1 = arith.constant 1 : index
    %c0_14 = arith.constant 0 : index
    %c0_15 = arith.constant 0 : index
    %11 = vector.load %arg5[%c0_12, %c0_13, %c1, %c0_14, %c0_15] : memref<1x8x8x2x2xf32, #tpu.memory_space<vmem>>, vector<1x1x1x2x2xf32>
    %12 = vector.shape_cast %11 : vector<1x1x1x2x2xf32> to vector<2x2xf32>
    %13 = vector.shape_cast %10 : vector<2x2xf32> to vector<1x1x1x2x2xf32>
    tpu.vector_store %arg5[%c0_12, %c0_13, %c1, %c0_14, %c0_15], %13 {strides = array<i32>} : memref<1x8x8x2x2xf32, #tpu.memory_space<vmem>>, vector<1x1x1x2x2xf32>,
    %14 = vector.extract_strided_slice %5 {offsets = [0, 4], sizes = [2, 2], strides = [1, 1]} : vector<16x16xf32> to vector<2x2xf32>
    %c0_16 = arith.constant 0 : index
    %c0_17 = arith.constant 0 : index
    %c2 = arith.constant 2 : index
    %c0_18 = arith.constant 0 : index
    %c0_19 = arith.constant 0 : index
    %15 = vector.load %arg5[%c0_16, %c0_17, %c2, %c0_18, %c0_19] : memref<1x8x8x2x2xf32, #tpu.memory_space<vmem>>, vector<1x1x1x2x2xf32>
    %16 = vector.shape_cast %15 : vector<1x1x1x2x2xf32> to vector<2x2xf32>
    %17 = vector.shape_cast %14 : vector<2x2xf32> to vector<1x1x1x2x2xf32>
    tpu.vector_store %arg5[%c0_16, %c0_17, %c2, %c0_18, %c0_19], %17 {strides = array<i32>} : memref<1x8x8x2x2xf32, #tpu.memory_space<vmem>>, vector<1x1x1x2x2xf32>,
    %18 = vector.extract_strided_slice %5 {offsets = [0, 6], sizes = [2, 2], strides = [1, 1]} : vector<16x16xf32> to vector<2x2xf32>
    %c0_20 = arith.constant 0 : index
    %c0_21 = arith.constant 0 : index
    %c3 = arith.constant 3 : index
    %c0_22 = arith.constant 0 : index
    %c0_23 = arith.constant 0 : index
    %19 = vector.load %arg5[%c0_20, %c0_21, %c3, %c0_22, %c0_23] : memref<1x8x8x2x2xf32, #tpu.memory_space<vmem>>, vector<1x1x1x2x2xf32>
    %20 = vector.shape_cast %19 : vector<1x1x1x2x2xf32> to vector<2x2xf32>
    %21 = vector.shape_cast %18 : vector<2x2xf32> to vector<1x1x1x2x2xf32>
    tpu.vector_store %arg5[%c0_20, %c0_21, %c3, %c0_22, %c0_23], %21 {strides = array<i32>} : memref<1x8x8x2x2xf32, #tpu.memory_space<vmem>>, vector<1x1x1x2x2xf32>,
    %22 = vector.extract_strided_slice %5 {offsets = [0, 8], sizes = [2, 2], strides = [1, 1]} : vector<16x16xf32> to vector<2x2xf32>
    %c0_24 = arith.constant 0 : index
    %c0_25 = arith.constant 0 : index
    %c4 = arith.constant 4 : index
    %c0_26 = arith.constant 0 : index
    %c0_27 = arith.constant 0 : index
    %23 = vector.load %arg5[%c0_24, %c0_25, %c4, %c0_26, %c0_27] : memref<1x8x8x2x2xf32, #tpu.memory_space<vmem>>, vector<1x1x1x2x2xf32>
    %24 = vector.shape_cast %23 : vector<1x1x1x2x2xf32> to vector<2x2xf32>
    %25 = vector.shape_cast %22 : vector<2x2xf32> to vector<1x1x1x2x2xf32>
    tpu.vector_store %arg5[%c0_24, %c0_25, %c4, %c0_26, %c0_27], %25 {strides = array<i32>} : memref<1x8x8x2x2xf32, #tpu.memory_space<vmem>>, vector<1x1x1x2x2xf32>,
    %26 = vector.extract_strided_slice %5 {offsets = [0, 10], sizes = [2, 2], strides = [1, 1]} : vector<16x16xf32> to vector<2x2xf32>
    %c0_28 = arith.constant 0 : index
    %c0_29 = arith.constant 0 : index
    %c5 = arith.constant 5 : index
    %c0_30 = arith.constant 0 : index
    %c0_31 = arith.constant 0 : index
    %27 = vector.load %arg5[%c0_28, %c0_29, %c5, %c0_30, %c0_31] : memref<1x8x8x2x2xf32, #tpu.memory_space<vmem>>, vector<1x1x1x2x2xf32>
    %28 = vector.shape_cast %27 : vector<1x1x1x2x2xf32> to vector<2x2xf32>
    %29 = vector.shape_cast %26 : vector<2x2xf32> to vector<1x1x1x2x2xf32>
    tpu.vector_store %arg5[%c0_28, %c0_29, %c5, %c0_30, %c0_31], %29 {strides = array<i32>} : memref<1x8x8x2x2xf32, #tpu.memory_space<vmem>>, vector<1x1x1x2x2xf32>,
    %30 = vector.extract_strided_slice %5 {offsets = [0, 12], sizes = [2, 2], strides = [1, 1]} : vector<16x16xf32> to vector<2x2xf32>
    %c0_32 = arith.constant 0 : index
    %c0_33 = arith.constant 0 : index
    %c6 = arith.constant 6 : index
    %c0_34 = arith.constant 0 : index
    %c0_35 = arith.constant 0 : index
    %31 = vector.load %arg5[%c0_32, %c0_33, %c6, %c0_34, %c0_35] : memref<1x8x8x2x2xf32, #tpu.memory_space<vmem>>, vector<1x1x1x2x2xf32>
    %32 = vector.shape_cast %31 : vector<1x1x1x2x2xf32> to vector<2x2xf32>
    %33 = vector.shape_cast %30 : vector<2x2xf32> to vector<1x1x1x2x2xf32>
    tpu.vector_store %arg5[%c0_32, %c0_33, %c6, %c0_34, %c0_35], %33 {strides = array<i32>} : memref<1x8x8x2x2xf32, #tpu.memory_space<vmem>>, vector<1x1x1x2x2xf32>,
    %34 = vector.extract_strided_slice %5 {offsets = [0, 14], sizes = [2, 2], strides = [1, 1]} : vector<16x16xf32> to vector<2x2xf32>
    %c0_36 = arith.constant 0 : index
    %c0_37 = arith.constant 0 : index
    %c7 = arith.constant 7 : index
    %c0_38 = arith.constant 0 : index
    %c0_39 = arith.constant 0 : index
    %35 = vector.load %arg5[%c0_36, %c0_37, %c7, %c0_38, %c0_39] : memref<1x8x8x2x2xf32, #tpu.memory_space<vmem>>, vector<1x1x1x2x2xf32>
    %36 = vector.shape_cast %35 : vector<1x1x1x2x2xf32> to vector<2x2xf32>
    %37 = vector.shape_cast %34 : vector<2x2xf32> to vector<1x1x1x2x2xf32>
    tpu.vector_store %arg5[%c0_36, %c0_37, %c7, %c0_38, %c0_39], %37 {strides = array<i32>} : memref<1x8x8x2x2xf32, #tpu.memory_space<vmem>>, vector<1x1x1x2x2xf32>,
    %38 = vector.extract_strided_slice %5 {offsets = [2, 0], sizes = [2, 2], strides = [1, 1]} : vector<16x16xf32> to vector<2x2xf32>
    %c0_40 = arith.constant 0 : index
    %c1_41 = arith.constant 1 : index
    %c0_42 = arith.constant 0 : index
    %c0_43 = arith.constant 0 : index
    %c0_44 = arith.constant 0 : index
    %39 = vector.load %arg5[%c0_40, %c1_41, %c0_42, %c0_43, %c0_44] : memref<1x8x8x2x2xf32, #tpu.memory_space<vmem>>, vector<1x1x1x2x2xf32>
    %40 = vector.shape_cast %39 : vector<1x1x1x2x2xf32> to vector<2x2xf32>
    %41 = vector.shape_cast %38 : vector<2x2xf32> to vector<1x1x1x2x2xf32>
    tpu.vector_store %arg5[%c0_40, %c1_41, %c0_42, %c0_43, %c0_44], %41 {strides = array<i32>} : memref<1x8x8x2x2xf32, #tpu.memory_space<vmem>>, vector<1x1x1x2x2xf32>,
    %42 = vector.extract_strided_slice %5 {offsets = [2, 2], sizes = [2, 2], strides = [1, 1]} : vector<16x16xf32> to vector<2x2xf32>
    %c0_45 = arith.constant 0 : index
    %c1_46 = arith.constant 1 : index
    %c1_47 = arith.constant 1 : index
    %c0_48 = arith.constant 0 : index
    %c0_49 = arith.constant 0 : index
    %43 = vector.load %arg5[%c0_45, %c1_46, %c1_47, %c0_48, %c0_49] : memref<1x8x8x2x2xf32, #tpu.memory_space<vmem>>, vector<1x1x1x2x2xf32>
    %44 = vector.shape_cast %43 : vector<1x1x1x2x2xf32> to vector<2x2xf32>
    %45 = vector.shape_cast %42 : vector<2x2xf32> to vector<1x1x1x2x2xf32>
    tpu.vector_store %arg5[%c0_45, %c1_46, %c1_47, %c0_48, %c0_49], %45 {strides = array<i32>} : memref<1x8x8x2x2xf32, #tpu.memory_space<vmem>>, vector<1x1x1x2x2xf32>,
    %46 = vector.extract_strided_slice %5 {offsets = [2, 4], sizes = [2, 2], strides = [1, 1]} : vector<16x16xf32> to vector<2x2xf32>
    %c0_50 = arith.constant 0 : index
    %c1_51 = arith.constant 1 : index
    %c2_52 = arith.constant 2 : index
    %c0_53 = arith.constant 0 : index
    %c0_54 = arith.constant 0 : index
    %47 = vector.load %arg5[%c0_50, %c1_51, %c2_52, %c0_53, %c0_54] : memref<1x8x8x2x2xf32, #tpu.memory_space<vmem>>, vector<1x1x1x2x2xf32>
    %48 = vector.shape_cast %47 : vector<1x1x1x2x2xf32> to vector<2x2xf32>
    %49 = vector.shape_cast %46 : vector<2x2xf32> to vector<1x1x1x2x2xf32>
    tpu.vector_store %arg5[%c0_50, %c1_51, %c2_52, %c0_53, %c0_54], %49 {strides = array<i32>} : memref<1x8x8x2x2xf32, #tpu.memory_space<vmem>>, vector<1x1x1x2x2xf32>,
    %50 = vector.extract_strided_slice %5 {offsets = [2, 6], sizes = [2, 2], strides = [1, 1]} : vector<16x16xf32> to vector<2x2xf32>
    %c0_55 = arith.constant 0 : index
    %c1_56 = arith.constant 1 : index
    %c3_57 = arith.constant 3 : index
    %c0_58 = arith.constant 0 : index
    %c0_59 = arith.constant 0 : index
    %51 = vector.load %arg5[%c0_55, %c1_56, %c3_57, %c0_58, %c0_59] : memref<1x8x8x2x2xf32, #tpu.memory_space<vmem>>, vector<1x1x1x2x2xf32>
    %52 = vector.shape_cast %51 : vector<1x1x1x2x2xf32> to vector<2x2xf32>
    %53 = vector.shape_cast %50 : vector<2x2xf32> to vector<1x1x1x2x2xf32>
    tpu.vector_store %arg5[%c0_55, %c1_56, %c3_57, %c0_58, %c0_59], %53 {strides = array<i32>} : memref<1x8x8x2x2xf32, #tpu.memory_space<vmem>>, vector<1x1x1x2x2xf32>,
    %54 = vector.extract_strided_slice %5 {offsets = [2, 8], sizes = [2, 2], strides = [1, 1]} : vector<16x16xf32> to vector<2x2xf32>
    %c0_60 = arith.constant 0 : index
    %c1_61 = arith.constant 1 : index
    %c4_62 = arith.constant 4 : index
    %c0_63 = arith.constant 0 : index
    %c0_64 = arith.constant 0 : index
    %55 = vector.load %arg5[%c0_60, %c1_61, %c4_62, %c0_63, %c0_64] : memref<1x8x8x2x2xf32, #tpu.memory_space<vmem>>, vector<1x1x1x2x2xf32>
    %56 = vector.shape_cast %55 : vector<1x1x1x2x2xf32> to vector<2x2xf32>
    %57 = vector.shape_cast %54 : vector<2x2xf32> to vector<1x1x1x2x2xf32>
    tpu.vector_store %arg5[%c0_60, %c1_61, %c4_62, %c0_63, %c0_64], %57 {strides = array<i32>} : memref<1x8x8x2x2xf32, #tpu.memory_space<vmem>>, vector<1x1x1x2x2xf32>,
    %58 = vector.extract_strided_slice %5 {offsets = [2, 10], sizes = [2, 2], strides = [1, 1]} : vector<16x16xf32> to vector<2x2xf32>
    %c0_65 = arith.constant 0 : index
    %c1_66 = arith.constant 1 : index
    %c5_67 = arith.constant 5 : index
    %c0_68 = arith.constant 0 : index
    %c0_69 = arith.constant 0 : index
    %59 = vector.load %arg5[%c0_65, %c1_66, %c5_67, %c0_68, %c0_69] : memref<1x8x8x2x2xf32, #tpu.memory_space<vmem>>, vector<1x1x1x2x2xf32>
    %60 = vector.shape_cast %59 : vector<1x1x1x2x2xf32> to vector<2x2xf32>
    %61 = vector.shape_cast %58 : vector<2x2xf32> to vector<1x1x1x2x2xf32>
    tpu.vector_store %arg5[%c0_65, %c1_66, %c5_67, %c0_68, %c0_69], %61 {strides = array<i32>} : memref<1x8x8x2x2xf32, #tpu.memory_space<vmem>>, vector<1x1x1x2x2xf32>,
    %62 = vector.extract_strided_slice %5 {offsets = [2, 12], sizes = [2, 2], strides = [1, 1]} : vector<16x16xf32> to vector<2x2xf32>
    %c0_70 = arith.constant 0 : index
    %c1_71 = arith.constant 1 : index
    %c6_72 = arith.constant 6 : index
    %c0_73 = arith.constant 0 : index
    %c0_74 = arith.constant 0 : index
    %63 = vector.load %arg5[%c0_70, %c1_71, %c6_72, %c0_73, %c0_74] : memref<1x8x8x2x2xf32, #tpu.memory_space<vmem>>, vector<1x1x1x2x2xf32>
    %64 = vector.shape_cast %63 : vector<1x1x1x2x2xf32> to vector<2x2xf32>
    %65 = vector.shape_cast %62 : vector<2x2xf32> to vector<1x1x1x2x2xf32>
    tpu.vector_store %arg5[%c0_70, %c1_71, %c6_72, %c0_73, %c0_74], %65 {strides = array<i32>} : memref<1x8x8x2x2xf32, #tpu.memory_space<vmem>>, vector<1x1x1x2x2xf32>,
    %66 = vector.extract_strided_slice %5 {offsets = [2, 14], sizes = [2, 2], strides = [1, 1]} : vector<16x16xf32> to vector<2x2xf32>
    %c0_75 = arith.constant 0 : index
    %c1_76 = arith.constant 1 : index
    %c7_77 = arith.constant 7 : index
    %c0_78 = arith.constant 0 : index
    %c0_79 = arith.constant 0 : index
    %67 = vector.load %arg5[%c0_75, %c1_76, %c7_77, %c0_78, %c0_79] : memref<1x8x8x2x2xf32, #tpu.memory_space<vmem>>, vector<1x1x1x2x2xf32>
    %68 = vector.shape_cast %67 : vector<1x1x1x2x2xf32> to vector<2x2xf32>
    %69 = vector.shape_cast %66 : vector<2x2xf32> to vector<1x1x1x2x2xf32>
    tpu.vector_store %arg5[%c0_75, %c1_76, %c7_77, %c0_78, %c0_79], %69 {strides = array<i32>} : memref<1x8x8x2x2xf32, #tpu.memory_space<vmem>>, vector<1x1x1x2x2xf32>,
    %70 = vector.extract_strided_slice %5 {offsets = [4, 0], sizes = [2, 2], strides = [1, 1]} : vector<16x16xf32> to vector<2x2xf32>
    %c0_80 = arith.constant 0 : index
    %c2_81 = arith.constant 2 : index
    %c0_82 = arith.constant 0 : index
    %c0_83 = arith.constant 0 : index
    %c0_84 = arith.constant 0 : index
    %71 = vector.load %arg5[%c0_80, %c2_81, %c0_82, %c0_83, %c0_84] : memref<1x8x8x2x2xf32, #tpu.memory_space<vmem>>, vector<1x1x1x2x2xf32>
    %72 = vector.shape_cast %71 : vector<1x1x1x2x2xf32> to vector<2x2xf32>
    %73 = vector.shape_cast %70 : vector<2x2xf32> to vector<1x1x1x2x2xf32>
    tpu.vector_store %arg5[%c0_80, %c2_81, %c0_82, %c0_83, %c0_84], %73 {strides = array<i32>} : memref<1x8x8x2x2xf32, #tpu.memory_space<vmem>>, vector<1x1x1x2x2xf32>,
    %74 = vector.extract_strided_slice %5 {offsets = [4, 2], sizes = [2, 2], strides = [1, 1]} : vector<16x16xf32> to vector<2x2xf32>
    %c0_85 = arith.constant 0 : index
    %c2_86 = arith.constant 2 : index
    %c1_87 = arith.constant 1 : index
    %c0_88 = arith.constant 0 : index
    %c0_89 = arith.constant 0 : index
    %75 = vector.load %arg5[%c0_85, %c2_86, %c1_87, %c0_88, %c0_89] : memref<1x8x8x2x2xf32, #tpu.memory_space<vmem>>, vector<1x1x1x2x2xf32>
    %76 = vector.shape_cast %75 : vector<1x1x1x2x2xf32> to vector<2x2xf32>
    %77 = vector.shape_cast %74 : vector<2x2xf32> to vector<1x1x1x2x2xf32>
    tpu.vector_store %arg5[%c0_85, %c2_86, %c1_87, %c0_88, %c0_89], %77 {strides = array<i32>} : memref<1x8x8x2x2xf32, #tpu.memory_space<vmem>>, vector<1x1x1x2x2xf32>,
    %78 = vector.extract_strided_slice %5 {offsets = [4, 4], sizes = [2, 2], strides = [1, 1]} : vector<16x16xf32> to vector<2x2xf32>
    %c0_90 = arith.constant 0 : index
    %c2_91 = arith.constant 2 : index
    %c2_92 = arith.constant 2 : index
    %c0_93 = arith.constant 0 : index
    %c0_94 = arith.constant 0 : index
    %79 = vector.load %arg5[%c0_90, %c2_91, %c2_92, %c0_93, %c0_94] : memref<1x8x8x2x2xf32, #tpu.memory_space<vmem>>, vector<1x1x1x2x2xf32>
    %80 = vector.shape_cast %79 : vector<1x1x1x2x2xf32> to vector<2x2xf32>
    %81 = vector.shape_cast %78 : vector<2x2xf32> to vector<1x1x1x2x2xf32>
    tpu.vector_store %arg5[%c0_90, %c2_91, %c2_92, %c0_93, %c0_94], %81 {strides = array<i32>} : memref<1x8x8x2x2xf32, #tpu.memory_space<vmem>>, vector<1x1x1x2x2xf32>,
    %82 = vector.extract_strided_slice %5 {offsets = [4, 6], sizes = [2, 2], strides = [1, 1]} : vector<16x16xf32> to vector<2x2xf32>
    %c0_95 = arith.constant 0 : index
    %c2_96 = arith.constant 2 : index
    %c3_97 = arith.constant 3 : index
    %c0_98 = arith.constant 0 : index
    %c0_99 = arith.constant 0 : index
    %83 = vector.load %arg5[%c0_95, %c2_96, %c3_97, %c0_98, %c0_99] : memref<1x8x8x2x2xf32, #tpu.memory_space<vmem>>, vector<1x1x1x2x2xf32>
    %84 = vector.shape_cast %83 : vector<1x1x1x2x2xf32> to vector<2x2xf32>
    %85 = vector.shape_cast %82 : vector<2x2xf32> to vector<1x1x1x2x2xf32>
    tpu.vector_store %arg5[%c0_95, %c2_96, %c3_97, %c0_98, %c0_99], %85 {strides = array<i32>} : memref<1x8x8x2x2xf32, #tpu.memory_space<vmem>>, vector<1x1x1x2x2xf32>,
    %86 = vector.extract_strided_slice %5 {offsets = [4, 8], sizes = [2, 2], strides = [1, 1]} : vector<16x16xf32> to vector<2x2xf32>
    %c0_100 = arith.constant 0 : index
    %c2_101 = arith.constant 2 : index
    %c4_102 = arith.constant 4 : index
    %c0_103 = arith.constant 0 : index
    %c0_104 = arith.constant 0 : index
    %87 = vector.load %arg5[%c0_100, %c2_101, %c4_102, %c0_103, %c0_104] : memref<1x8x8x2x2xf32, #tpu.memory_space<vmem>>, vector<1x1x1x2x2xf32>
    %88 = vector.shape_cast %87 : vector<1x1x1x2x2xf32> to vector<2x2xf32>
    %89 = vector.shape_cast %86 : vector<2x2xf32> to vector<1x1x1x2x2xf32>
    tpu.vector_store %arg5[%c0_100, %c2_101, %c4_102, %c0_103, %c0_104], %89 {strides = array<i32>} : memref<1x8x8x2x2xf32, #tpu.memory_space<vmem>>, vector<1x1x1x2x2xf32>,
    %90 = vector.extract_strided_slice %5 {offsets = [4, 10], sizes = [2, 2], strides = [1, 1]} : vector<16x16xf32> to vector<2x2xf32>
    %c0_105 = arith.constant 0 : index
    %c2_106 = arith.constant 2 : index
    %c5_107 = arith.constant 5 : index
    %c0_108 = arith.constant 0 : index
    %c0_109 = arith.constant 0 : index
    %91 = vector.load %arg5[%c0_105, %c2_106, %c5_107, %c0_108, %c0_109] : memref<1x8x8x2x2xf32, #tpu.memory_space<vmem>>, vector<1x1x1x2x2xf32>
    %92 = vector.shape_cast %91 : vector<1x1x1x2x2xf32> to vector<2x2xf32>
    %93 = vector.shape_cast %90 : vector<2x2xf32> to vector<1x1x1x2x2xf32>
    tpu.vector_store %arg5[%c0_105, %c2_106, %c5_107, %c0_108, %c0_109], %93 {strides = array<i32>} : memref<1x8x8x2x2xf32, #tpu.memory_space<vmem>>, vector<1x1x1x2x2xf32>,
    %94 = vector.extract_strided_slice %5 {offsets = [4, 12], sizes = [2, 2], strides = [1, 1]} : vector<16x16xf32> to vector<2x2xf32>
    %c0_110 = arith.constant 0 : index
    %c2_111 = arith.constant 2 : index
    %c6_112 = arith.constant 6 : index
    %c0_113 = arith.constant 0 : index
    %c0_114 = arith.constant 0 : index
    %95 = vector.load %arg5[%c0_110, %c2_111, %c6_112, %c0_113, %c0_114] : memref<1x8x8x2x2xf32, #tpu.memory_space<vmem>>, vector<1x1x1x2x2xf32>
    %96 = vector.shape_cast %95 : vector<1x1x1x2x2xf32> to vector<2x2xf32>
    %97 = vector.shape_cast %94 : vector<2x2xf32> to vector<1x1x1x2x2xf32>
    tpu.vector_store %arg5[%c0_110, %c2_111, %c6_112, %c0_113, %c0_114], %97 {strides = array<i32>} : memref<1x8x8x2x2xf32, #tpu.memory_space<vmem>>, vector<1x1x1x2x2xf32>,
    %98 = vector.extract_strided_slice %5 {offsets = [4, 14], sizes = [2, 2], strides = [1, 1]} : vector<16x16xf32> to vector<2x2xf32>
    %c0_115 = arith.constant 0 : index
    %c2_116 = arith.constant 2 : index
    %c7_117 = arith.constant 7 : index
    %c0_118 = arith.constant 0 : index
    %c0_119 = arith.constant 0 : index
    %99 = vector.load %arg5[%c0_115, %c2_116, %c7_117, %c0_118, %c0_119] : memref<1x8x8x2x2xf32, #tpu.memory_space<vmem>>, vector<1x1x1x2x2xf32>
    %100 = vector.shape_cast %99 : vector<1x1x1x2x2xf32> to vector<2x2xf32>
    %101 = vector.shape_cast %98 : vector<2x2xf32> to vector<1x1x1x2x2xf32>
    tpu.vector_store %arg5[%c0_115, %c2_116, %c7_117, %c0_118, %c0_119], %101 {strides = array<i32>} : memref<1x8x8x2x2xf32, #tpu.memory_space<vmem>>, vector<1x1x1x2x2xf32>,
    %102 = vector.extract_strided_slice %5 {offsets = [6, 0], sizes = [2, 2], strides = [1, 1]} : vector<16x16xf32> to vector<2x2xf32>
    %c0_120 = arith.constant 0 : index
    %c3_121 = arith.constant 3 : index
    %c0_122 = arith.constant 0 : index
    %c0_123 = arith.constant 0 : index
    %c0_124 = arith.constant 0 : index
    %103 = vector.load %arg5[%c0_120, %c3_121, %c0_122, %c0_123, %c0_124] : memref<1x8x8x2x2xf32, #tpu.memory_space<vmem>>, vector<1x1x1x2x2xf32>
    %104 = vector.shape_cast %103 : vector<1x1x1x2x2xf32> to vector<2x2xf32>
    %105 = vector.shape_cast %102 : vector<2x2xf32> to vector<1x1x1x2x2xf32>
    tpu.vector_store %arg5[%c0_120, %c3_121, %c0_122, %c0_123, %c0_124], %105 {strides = array<i32>} : memref<1x8x8x2x2xf32, #tpu.memory_space<vmem>>, vector<1x1x1x2x2xf32>,
    %106 = vector.extract_strided_slice %5 {offsets = [6, 2], sizes = [2, 2], strides = [1, 1]} : vector<16x16xf32> to vector<2x2xf32>
    %c0_125 = arith.constant 0 : index
    %c3_126 = arith.constant 3 : index
    %c1_127 = arith.constant 1 : index
    %c0_128 = arith.constant 0 : index
    %c0_129 = arith.constant 0 : index
    %107 = vector.load %arg5[%c0_125, %c3_126, %c1_127, %c0_128, %c0_129] : memref<1x8x8x2x2xf32, #tpu.memory_space<vmem>>, vector<1x1x1x2x2xf32>
    %108 = vector.shape_cast %107 : vector<1x1x1x2x2xf32> to vector<2x2xf32>
    %109 = vector.shape_cast %106 : vector<2x2xf32> to vector<1x1x1x2x2xf32>
    tpu.vector_store %arg5[%c0_125, %c3_126, %c1_127, %c0_128, %c0_129], %109 {strides = array<i32>} : memref<1x8x8x2x2xf32, #tpu.memory_space<vmem>>, vector<1x1x1x2x2xf32>,
    %110 = vector.extract_strided_slice %5 {offsets = [6, 4], sizes = [2, 2], strides = [1, 1]} : vector<16x16xf32> to vector<2x2xf32>
    %c0_130 = arith.constant 0 : index
    %c3_131 = arith.constant 3 : index
    %c2_132 = arith.constant 2 : index
    %c0_133 = arith.constant 0 : index
    %c0_134 = arith.constant 0 : index
    %111 = vector.load %arg5[%c0_130, %c3_131, %c2_132, %c0_133, %c0_134] : memref<1x8x8x2x2xf32, #tpu.memory_space<vmem>>, vector<1x1x1x2x2xf32>
    %112 = vector.shape_cast %111 : vector<1x1x1x2x2xf32> to vector<2x2xf32>
    %113 = vector.shape_cast %110 : vector<2x2xf32> to vector<1x1x1x2x2xf32>
    tpu.vector_store %arg5[%c0_130, %c3_131, %c2_132, %c0_133, %c0_134], %113 {strides = array<i32>} : memref<1x8x8x2x2xf32, #tpu.memory_space<vmem>>, vector<1x1x1x2x2xf32>,
    %114 = vector.extract_strided_slice %5 {offsets = [6, 6], sizes = [2, 2], strides = [1, 1]} : vector<16x16xf32> to vector<2x2xf32>
    %c0_135 = arith.constant 0 : index
    %c3_136 = arith.constant 3 : index
    %c3_137 = arith.constant 3 : index
    %c0_138 = arith.constant 0 : index
    %c0_139 = arith.constant 0 : index
    %115 = vector.load %arg5[%c0_135, %c3_136, %c3_137, %c0_138, %c0_139] : memref<1x8x8x2x2xf32, #tpu.memory_space<vmem>>, vector<1x1x1x2x2xf32>
    %116 = vector.shape_cast %115 : vector<1x1x1x2x2xf32> to vector<2x2xf32>
    %117 = vector.shape_cast %114 : vector<2x2xf32> to vector<1x1x1x2x2xf32>
    tpu.vector_store %arg5[%c0_135, %c3_136, %c3_137, %c0_138, %c0_139], %117 {strides = array<i32>} : memref<1x8x8x2x2xf32, #tpu.memory_space<vmem>>, vector<1x1x1x2x2xf32>,
    %118 = vector.extract_strided_slice %5 {offsets = [6, 8], sizes = [2, 2], strides = [1, 1]} : vector<16x16xf32> to vector<2x2xf32>
    %c0_140 = arith.constant 0 : index
    %c3_141 = arith.constant 3 : index
    %c4_142 = arith.constant 4 : index
    %c0_143 = arith.constant 0 : index
    %c0_144 = arith.constant 0 : index
    %119 = vector.load %arg5[%c0_140, %c3_141, %c4_142, %c0_143, %c0_144] : memref<1x8x8x2x2xf32, #tpu.memory_space<vmem>>, vector<1x1x1x2x2xf32>
    %120 = vector.shape_cast %119 : vector<1x1x1x2x2xf32> to vector<2x2xf32>
    %121 = vector.shape_cast %118 : vector<2x2xf32> to vector<1x1x1x2x2xf32>
    tpu.vector_store %arg5[%c0_140, %c3_141, %c4_142, %c0_143, %c0_144], %121 {strides = array<i32>} : memref<1x8x8x2x2xf32, #tpu.memory_space<vmem>>, vector<1x1x1x2x2xf32>,
    %122 = vector.extract_strided_slice %5 {offsets = [6, 10], sizes = [2, 2], strides = [1, 1]} : vector<16x16xf32> to vector<2x2xf32>
    %c0_145 = arith.constant 0 : index
    %c3_146 = arith.constant 3 : index
    %c5_147 = arith.constant 5 : index
    %c0_148 = arith.constant 0 : index
    %c0_149 = arith.constant 0 : index
    %123 = vector.load %arg5[%c0_145, %c3_146, %c5_147, %c0_148, %c0_149] : memref<1x8x8x2x2xf32, #tpu.memory_space<vmem>>, vector<1x1x1x2x2xf32>
    %124 = vector.shape_cast %123 : vector<1x1x1x2x2xf32> to vector<2x2xf32>
    %125 = vector.shape_cast %122 : vector<2x2xf32> to vector<1x1x1x2x2xf32>
    tpu.vector_store %arg5[%c0_145, %c3_146, %c5_147, %c0_148, %c0_149], %125 {strides = array<i32>} : memref<1x8x8x2x2xf32, #tpu.memory_space<vmem>>, vector<1x1x1x2x2xf32>,
    %126 = vector.extract_strided_slice %5 {offsets = [6, 12], sizes = [2, 2], strides = [1, 1]} : vector<16x16xf32> to vector<2x2xf32>
    %c0_150 = arith.constant 0 : index
    %c3_151 = arith.constant 3 : index
    %c6_152 = arith.constant 6 : index
    %c0_153 = arith.constant 0 : index
    %c0_154 = arith.constant 0 : index
    %127 = vector.load %arg5[%c0_150, %c3_151, %c6_152, %c0_153, %c0_154] : memref<1x8x8x2x2xf32, #tpu.memory_space<vmem>>, vector<1x1x1x2x2xf32>
    %128 = vector.shape_cast %127 : vector<1x1x1x2x2xf32> to vector<2x2xf32>
    %129 = vector.shape_cast %126 : vector<2x2xf32> to vector<1x1x1x2x2xf32>
    tpu.vector_store %arg5[%c0_150, %c3_151, %c6_152, %c0_153, %c0_154], %129 {strides = array<i32>} : memref<1x8x8x2x2xf32, #tpu.memory_space<vmem>>, vector<1x1x1x2x2xf32>,
    %130 = vector.extract_strided_slice %5 {offsets = [6, 14], sizes = [2, 2], strides = [1, 1]} : vector<16x16xf32> to vector<2x2xf32>
    %c0_155 = arith.constant 0 : index
    %c3_156 = arith.constant 3 : index
    %c7_157 = arith.constant 7 : index
    %c0_158 = arith.constant 0 : index
    %c0_159 = arith.constant 0 : index
    %131 = vector.load %arg5[%c0_155, %c3_156, %c7_157, %c0_158, %c0_159] : memref<1x8x8x2x2xf32, #tpu.memory_space<vmem>>, vector<1x1x1x2x2xf32>
    %132 = vector.shape_cast %131 : vector<1x1x1x2x2xf32> to vector<2x2xf32>
    %133 = vector.shape_cast %130 : vector<2x2xf32> to vector<1x1x1x2x2xf32>
    tpu.vector_store %arg5[%c0_155, %c3_156, %c7_157, %c0_158, %c0_159], %133 {strides = array<i32>} : memref<1x8x8x2x2xf32, #tpu.memory_space<vmem>>, vector<1x1x1x2x2xf32>,
    %134 = vector.extract_strided_slice %5 {offsets = [8, 0], sizes = [2, 2], strides = [1, 1]} : vector<16x16xf32> to vector<2x2xf32>
    %c0_160 = arith.constant 0 : index
    %c4_161 = arith.constant 4 : index
    %c0_162 = arith.constant 0 : index
    %c0_163 = arith.constant 0 : index
    %c0_164 = arith.constant 0 : index
    %135 = vector.load %arg5[%c0_160, %c4_161, %c0_162, %c0_163, %c0_164] : memref<1x8x8x2x2xf32, #tpu.memory_space<vmem>>, vector<1x1x1x2x2xf32>
    %136 = vector.shape_cast %135 : vector<1x1x1x2x2xf32> to vector<2x2xf32>
    %137 = vector.shape_cast %134 : vector<2x2xf32> to vector<1x1x1x2x2xf32>
    tpu.vector_store %arg5[%c0_160, %c4_161, %c0_162, %c0_163, %c0_164], %137 {strides = array<i32>} : memref<1x8x8x2x2xf32, #tpu.memory_space<vmem>>, vector<1x1x1x2x2xf32>,
    %138 = vector.extract_strided_slice %5 {offsets = [8, 2], sizes = [2, 2], strides = [1, 1]} : vector<16x16xf32> to vector<2x2xf32>
    %c0_165 = arith.constant 0 : index
    %c4_166 = arith.constant 4 : index
    %c1_167 = arith.constant 1 : index
    %c0_168 = arith.constant 0 : index
    %c0_169 = arith.constant 0 : index
    %139 = vector.load %arg5[%c0_165, %c4_166, %c1_167, %c0_168, %c0_169] : memref<1x8x8x2x2xf32, #tpu.memory_space<vmem>>, vector<1x1x1x2x2xf32>
    %140 = vector.shape_cast %139 : vector<1x1x1x2x2xf32> to vector<2x2xf32>
    %141 = vector.shape_cast %138 : vector<2x2xf32> to vector<1x1x1x2x2xf32>
    tpu.vector_store %arg5[%c0_165, %c4_166, %c1_167, %c0_168, %c0_169], %141 {strides = array<i32>} : memref<1x8x8x2x2xf32, #tpu.memory_space<vmem>>, vector<1x1x1x2x2xf32>,
    %142 = vector.extract_strided_slice %5 {offsets = [8, 4], sizes = [2, 2], strides = [1, 1]} : vector<16x16xf32> to vector<2x2xf32>
    %c0_170 = arith.constant 0 : index
    %c4_171 = arith.constant 4 : index
    %c2_172 = arith.constant 2 : index
    %c0_173 = arith.constant 0 : index
    %c0_174 = arith.constant 0 : index
    %143 = vector.load %arg5[%c0_170, %c4_171, %c2_172, %c0_173, %c0_174] : memref<1x8x8x2x2xf32, #tpu.memory_space<vmem>>, vector<1x1x1x2x2xf32>
    %144 = vector.shape_cast %143 : vector<1x1x1x2x2xf32> to vector<2x2xf32>
    %145 = vector.shape_cast %142 : vector<2x2xf32> to vector<1x1x1x2x2xf32>
    tpu.vector_store %arg5[%c0_170, %c4_171, %c2_172, %c0_173, %c0_174], %145 {strides = array<i32>} : memref<1x8x8x2x2xf32, #tpu.memory_space<vmem>>, vector<1x1x1x2x2xf32>,
    %146 = vector.extract_strided_slice %5 {offsets = [8, 6], sizes = [2, 2], strides = [1, 1]} : vector<16x16xf32> to vector<2x2xf32>
    %c0_175 = arith.constant 0 : index
    %c4_176 = arith.constant 4 : index
    %c3_177 = arith.constant 3 : index
    %c0_178 = arith.constant 0 : index
    %c0_179 = arith.constant 0 : index
    %147 = vector.load %arg5[%c0_175, %c4_176, %c3_177, %c0_178, %c0_179] : memref<1x8x8x2x2xf32, #tpu.memory_space<vmem>>, vector<1x1x1x2x2xf32>
    %148 = vector.shape_cast %147 : vector<1x1x1x2x2xf32> to vector<2x2xf32>
    %149 = vector.shape_cast %146 : vector<2x2xf32> to vector<1x1x1x2x2xf32>
    tpu.vector_store %arg5[%c0_175, %c4_176, %c3_177, %c0_178, %c0_179], %149 {strides = array<i32>} : memref<1x8x8x2x2xf32, #tpu.memory_space<vmem>>, vector<1x1x1x2x2xf32>,
    %150 = vector.extract_strided_slice %5 {offsets = [8, 8], sizes = [2, 2], strides = [1, 1]} : vector<16x16xf32> to vector<2x2xf32>
    %c0_180 = arith.constant 0 : index
    %c4_181 = arith.constant 4 : index
    %c4_182 = arith.constant 4 : index
    %c0_183 = arith.constant 0 : index
    %c0_184 = arith.constant 0 : index
    %151 = vector.load %arg5[%c0_180, %c4_181, %c4_182, %c0_183, %c0_184] : memref<1x8x8x2x2xf32, #tpu.memory_space<vmem>>, vector<1x1x1x2x2xf32>
    %152 = vector.shape_cast %151 : vector<1x1x1x2x2xf32> to vector<2x2xf32>
    %153 = vector.shape_cast %150 : vector<2x2xf32> to vector<1x1x1x2x2xf32>
    tpu.vector_store %arg5[%c0_180, %c4_181, %c4_182, %c0_183, %c0_184], %153 {strides = array<i32>} : memref<1x8x8x2x2xf32, #tpu.memory_space<vmem>>, vector<1x1x1x2x2xf32>,
    %154 = vector.extract_strided_slice %5 {offsets = [8, 10], sizes = [2, 2], strides = [1, 1]} : vector<16x16xf32> to vector<2x2xf32>
    %c0_185 = arith.constant 0 : index
    %c4_186 = arith.constant 4 : index
    %c5_187 = arith.constant 5 : index
    %c0_188 = arith.constant 0 : index
    %c0_189 = arith.constant 0 : index
    %155 = vector.load %arg5[%c0_185, %c4_186, %c5_187, %c0_188, %c0_189] : memref<1x8x8x2x2xf32, #tpu.memory_space<vmem>>, vector<1x1x1x2x2xf32>
    %156 = vector.shape_cast %155 : vector<1x1x1x2x2xf32> to vector<2x2xf32>
    %157 = vector.shape_cast %154 : vector<2x2xf32> to vector<1x1x1x2x2xf32>
    tpu.vector_store %arg5[%c0_185, %c4_186, %c5_187, %c0_188, %c0_189], %157 {strides = array<i32>} : memref<1x8x8x2x2xf32, #tpu.memory_space<vmem>>, vector<1x1x1x2x2xf32>,
    %158 = vector.extract_strided_slice %5 {offsets = [8, 12], sizes = [2, 2], strides = [1, 1]} : vector<16x16xf32> to vector<2x2xf32>
    %c0_190 = arith.constant 0 : index
    %c4_191 = arith.constant 4 : index
    %c6_192 = arith.constant 6 : index
    %c0_193 = arith.constant 0 : index
    %c0_194 = arith.constant 0 : index
    %159 = vector.load %arg5[%c0_190, %c4_191, %c6_192, %c0_193, %c0_194] : memref<1x8x8x2x2xf32, #tpu.memory_space<vmem>>, vector<1x1x1x2x2xf32>
    %160 = vector.shape_cast %159 : vector<1x1x1x2x2xf32> to vector<2x2xf32>
    %161 = vector.shape_cast %158 : vector<2x2xf32> to vector<1x1x1x2x2xf32>
    tpu.vector_store %arg5[%c0_190, %c4_191, %c6_192, %c0_193, %c0_194], %161 {strides = array<i32>} : memref<1x8x8x2x2xf32, #tpu.memory_space<vmem>>, vector<1x1x1x2x2xf32>,
    %162 = vector.extract_strided_slice %5 {offsets = [8, 14], sizes = [2, 2], strides = [1, 1]} : vector<16x16xf32> to vector<2x2xf32>
    %c0_195 = arith.constant 0 : index
    %c4_196 = arith.constant 4 : index
    %c7_197 = arith.constant 7 : index
    %c0_198 = arith.constant 0 : index
    %c0_199 = arith.constant 0 : index
    %163 = vector.load %arg5[%c0_195, %c4_196, %c7_197, %c0_198, %c0_199] : memref<1x8x8x2x2xf32, #tpu.memory_space<vmem>>, vector<1x1x1x2x2xf32>
    %164 = vector.shape_cast %163 : vector<1x1x1x2x2xf32> to vector<2x2xf32>
    %165 = vector.shape_cast %162 : vector<2x2xf32> to vector<1x1x1x2x2xf32>
    tpu.vector_store %arg5[%c0_195, %c4_196, %c7_197, %c0_198, %c0_199], %165 {strides = array<i32>} : memref<1x8x8x2x2xf32, #tpu.memory_space<vmem>>, vector<1x1x1x2x2xf32>,
    %166 = vector.extract_strided_slice %5 {offsets = [10, 0], sizes = [2, 2], strides = [1, 1]} : vector<16x16xf32> to vector<2x2xf32>
    %c0_200 = arith.constant 0 : index
    %c5_201 = arith.constant 5 : index
    %c0_202 = arith.constant 0 : index
    %c0_203 = arith.constant 0 : index
    %c0_204 = arith.constant 0 : index
    %167 = vector.load %arg5[%c0_200, %c5_201, %c0_202, %c0_203, %c0_204] : memref<1x8x8x2x2xf32, #tpu.memory_space<vmem>>, vector<1x1x1x2x2xf32>
    %168 = vector.shape_cast %167 : vector<1x1x1x2x2xf32> to vector<2x2xf32>
    %169 = vector.shape_cast %166 : vector<2x2xf32> to vector<1x1x1x2x2xf32>
    tpu.vector_store %arg5[%c0_200, %c5_201, %c0_202, %c0_203, %c0_204], %169 {strides = array<i32>} : memref<1x8x8x2x2xf32, #tpu.memory_space<vmem>>, vector<1x1x1x2x2xf32>,
    %170 = vector.extract_strided_slice %5 {offsets = [10, 2], sizes = [2, 2], strides = [1, 1]} : vector<16x16xf32> to vector<2x2xf32>
    %c0_205 = arith.constant 0 : index
    %c5_206 = arith.constant 5 : index
    %c1_207 = arith.constant 1 : index
    %c0_208 = arith.constant 0 : index
    %c0_209 = arith.constant 0 : index
    %171 = vector.load %arg5[%c0_205, %c5_206, %c1_207, %c0_208, %c0_209] : memref<1x8x8x2x2xf32, #tpu.memory_space<vmem>>, vector<1x1x1x2x2xf32>
    %172 = vector.shape_cast %171 : vector<1x1x1x2x2xf32> to vector<2x2xf32>
    %173 = vector.shape_cast %170 : vector<2x2xf32> to vector<1x1x1x2x2xf32>
    tpu.vector_store %arg5[%c0_205, %c5_206, %c1_207, %c0_208, %c0_209], %173 {strides = array<i32>} : memref<1x8x8x2x2xf32, #tpu.memory_space<vmem>>, vector<1x1x1x2x2xf32>,
    %174 = vector.extract_strided_slice %5 {offsets = [10, 4], sizes = [2, 2], strides = [1, 1]} : vector<16x16xf32> to vector<2x2xf32>
    %c0_210 = arith.constant 0 : index
    %c5_211 = arith.constant 5 : index
    %c2_212 = arith.constant 2 : index
    %c0_213 = arith.constant 0 : index
    %c0_214 = arith.constant 0 : index
    %175 = vector.load %arg5[%c0_210, %c5_211, %c2_212, %c0_213, %c0_214] : memref<1x8x8x2x2xf32, #tpu.memory_space<vmem>>, vector<1x1x1x2x2xf32>
    %176 = vector.shape_cast %175 : vector<1x1x1x2x2xf32> to vector<2x2xf32>
    %177 = vector.shape_cast %174 : vector<2x2xf32> to vector<1x1x1x2x2xf32>
    tpu.vector_store %arg5[%c0_210, %c5_211, %c2_212, %c0_213, %c0_214], %177 {strides = array<i32>} : memref<1x8x8x2x2xf32, #tpu.memory_space<vmem>>, vector<1x1x1x2x2xf32>,
    %178 = vector.extract_strided_slice %5 {offsets = [10, 6], sizes = [2, 2], strides = [1, 1]} : vector<16x16xf32> to vector<2x2xf32>
    %c0_215 = arith.constant 0 : index
    %c5_216 = arith.constant 5 : index
    %c3_217 = arith.constant 3 : index
    %c0_218 = arith.constant 0 : index
    %c0_219 = arith.constant 0 : index
    %179 = vector.load %arg5[%c0_215, %c5_216, %c3_217, %c0_218, %c0_219] : memref<1x8x8x2x2xf32, #tpu.memory_space<vmem>>, vector<1x1x1x2x2xf32>
    %180 = vector.shape_cast %179 : vector<1x1x1x2x2xf32> to vector<2x2xf32>
    %181 = vector.shape_cast %178 : vector<2x2xf32> to vector<1x1x1x2x2xf32>
    tpu.vector_store %arg5[%c0_215, %c5_216, %c3_217, %c0_218, %c0_219], %181 {strides = array<i32>} : memref<1x8x8x2x2xf32, #tpu.memory_space<vmem>>, vector<1x1x1x2x2xf32>,
    %182 = vector.extract_strided_slice %5 {offsets = [10, 8], sizes = [2, 2], strides = [1, 1]} : vector<16x16xf32> to vector<2x2xf32>
    %c0_220 = arith.constant 0 : index
    %c5_221 = arith.constant 5 : index
    %c4_222 = arith.constant 4 : index
    %c0_223 = arith.constant 0 : index
    %c0_224 = arith.constant 0 : index
    %183 = vector.load %arg5[%c0_220, %c5_221, %c4_222, %c0_223, %c0_224] : memref<1x8x8x2x2xf32, #tpu.memory_space<vmem>>, vector<1x1x1x2x2xf32>
    %184 = vector.shape_cast %183 : vector<1x1x1x2x2xf32> to vector<2x2xf32>
    %185 = vector.shape_cast %182 : vector<2x2xf32> to vector<1x1x1x2x2xf32>
    tpu.vector_store %arg5[%c0_220, %c5_221, %c4_222, %c0_223, %c0_224], %185 {strides = array<i32>} : memref<1x8x8x2x2xf32, #tpu.memory_space<vmem>>, vector<1x1x1x2x2xf32>,
    %186 = vector.extract_strided_slice %5 {offsets = [10, 10], sizes = [2, 2], strides = [1, 1]} : vector<16x16xf32> to vector<2x2xf32>
    %c0_225 = arith.constant 0 : index
    %c5_226 = arith.constant 5 : index
    %c5_227 = arith.constant 5 : index
    %c0_228 = arith.constant 0 : index
    %c0_229 = arith.constant 0 : index
    %187 = vector.load %arg5[%c0_225, %c5_226, %c5_227, %c0_228, %c0_229] : memref<1x8x8x2x2xf32, #tpu.memory_space<vmem>>, vector<1x1x1x2x2xf32>
    %188 = vector.shape_cast %187 : vector<1x1x1x2x2xf32> to vector<2x2xf32>
    %189 = vector.shape_cast %186 : vector<2x2xf32> to vector<1x1x1x2x2xf32>
    tpu.vector_store %arg5[%c0_225, %c5_226, %c5_227, %c0_228, %c0_229], %189 {strides = array<i32>} : memref<1x8x8x2x2xf32, #tpu.memory_space<vmem>>, vector<1x1x1x2x2xf32>,
    %190 = vector.extract_strided_slice %5 {offsets = [10, 12], sizes = [2, 2], strides = [1, 1]} : vector<16x16xf32> to vector<2x2xf32>
    %c0_230 = arith.constant 0 : index
    %c5_231 = arith.constant 5 : index
    %c6_232 = arith.constant 6 : index
    %c0_233 = arith.constant 0 : index
    %c0_234 = arith.constant 0 : index
    %191 = vector.load %arg5[%c0_230, %c5_231, %c6_232, %c0_233, %c0_234] : memref<1x8x8x2x2xf32, #tpu.memory_space<vmem>>, vector<1x1x1x2x2xf32>
    %192 = vector.shape_cast %191 : vector<1x1x1x2x2xf32> to vector<2x2xf32>
    %193 = vector.shape_cast %190 : vector<2x2xf32> to vector<1x1x1x2x2xf32>
    tpu.vector_store %arg5[%c0_230, %c5_231, %c6_232, %c0_233, %c0_234], %193 {strides = array<i32>} : memref<1x8x8x2x2xf32, #tpu.memory_space<vmem>>, vector<1x1x1x2x2xf32>,
    %194 = vector.extract_strided_slice %5 {offsets = [10, 14], sizes = [2, 2], strides = [1, 1]} : vector<16x16xf32> to vector<2x2xf32>
    %c0_235 = arith.constant 0 : index
    %c5_236 = arith.constant 5 : index
    %c7_237 = arith.constant 7 : index
    %c0_238 = arith.constant 0 : index
    %c0_239 = arith.constant 0 : index
    %195 = vector.load %arg5[%c0_235, %c5_236, %c7_237, %c0_238, %c0_239] : memref<1x8x8x2x2xf32, #tpu.memory_space<vmem>>, vector<1x1x1x2x2xf32>
    %196 = vector.shape_cast %195 : vector<1x1x1x2x2xf32> to vector<2x2xf32>
    %197 = vector.shape_cast %194 : vector<2x2xf32> to vector<1x1x1x2x2xf32>
    tpu.vector_store %arg5[%c0_235, %c5_236, %c7_237, %c0_238, %c0_239], %197 {strides = array<i32>} : memref<1x8x8x2x2xf32, #tpu.memory_space<vmem>>, vector<1x1x1x2x2xf32>,
    %198 = vector.extract_strided_slice %5 {offsets = [12, 0], sizes = [2, 2], strides = [1, 1]} : vector<16x16xf32> to vector<2x2xf32>
    %c0_240 = arith.constant 0 : index
    %c6_241 = arith.constant 6 : index
    %c0_242 = arith.constant 0 : index
    %c0_243 = arith.constant 0 : index
    %c0_244 = arith.constant 0 : index
    %199 = vector.load %arg5[%c0_240, %c6_241, %c0_242, %c0_243, %c0_244] : memref<1x8x8x2x2xf32, #tpu.memory_space<vmem>>, vector<1x1x1x2x2xf32>
    %200 = vector.shape_cast %199 : vector<1x1x1x2x2xf32> to vector<2x2xf32>
    %201 = vector.shape_cast %198 : vector<2x2xf32> to vector<1x1x1x2x2xf32>
    tpu.vector_store %arg5[%c0_240, %c6_241, %c0_242, %c0_243, %c0_244], %201 {strides = array<i32>} : memref<1x8x8x2x2xf32, #tpu.memory_space<vmem>>, vector<1x1x1x2x2xf32>,
    %202 = vector.extract_strided_slice %5 {offsets = [12, 2], sizes = [2, 2], strides = [1, 1]} : vector<16x16xf32> to vector<2x2xf32>
    %c0_245 = arith.constant 0 : index
    %c6_246 = arith.constant 6 : index
    %c1_247 = arith.constant 1 : index
    %c0_248 = arith.constant 0 : index
    %c0_249 = arith.constant 0 : index
    %203 = vector.load %arg5[%c0_245, %c6_246, %c1_247, %c0_248, %c0_249] : memref<1x8x8x2x2xf32, #tpu.memory_space<vmem>>, vector<1x1x1x2x2xf32>
    %204 = vector.shape_cast %203 : vector<1x1x1x2x2xf32> to vector<2x2xf32>
    %205 = vector.shape_cast %202 : vector<2x2xf32> to vector<1x1x1x2x2xf32>
    tpu.vector_store %arg5[%c0_245, %c6_246, %c1_247, %c0_248, %c0_249], %205 {strides = array<i32>} : memref<1x8x8x2x2xf32, #tpu.memory_space<vmem>>, vector<1x1x1x2x2xf32>,
    %206 = vector.extract_strided_slice %5 {offsets = [12, 4], sizes = [2, 2], strides = [1, 1]} : vector<16x16xf32> to vector<2x2xf32>
    %c0_250 = arith.constant 0 : index
    %c6_251 = arith.constant 6 : index
    %c2_252 = arith.constant 2 : index
    %c0_253 = arith.constant 0 : index
    %c0_254 = arith.constant 0 : index
    %207 = vector.load %arg5[%c0_250, %c6_251, %c2_252, %c0_253, %c0_254] : memref<1x8x8x2x2xf32, #tpu.memory_space<vmem>>, vector<1x1x1x2x2xf32>
    %208 = vector.shape_cast %207 : vector<1x1x1x2x2xf32> to vector<2x2xf32>
    %209 = vector.shape_cast %206 : vector<2x2xf32> to vector<1x1x1x2x2xf32>
    tpu.vector_store %arg5[%c0_250, %c6_251, %c2_252, %c0_253, %c0_254], %209 {strides = array<i32>} : memref<1x8x8x2x2xf32, #tpu.memory_space<vmem>>, vector<1x1x1x2x2xf32>,
    %210 = vector.extract_strided_slice %5 {offsets = [12, 6], sizes = [2, 2], strides = [1, 1]} : vector<16x16xf32> to vector<2x2xf32>
    %c0_255 = arith.constant 0 : index
    %c6_256 = arith.constant 6 : index
    %c3_257 = arith.constant 3 : index
    %c0_258 = arith.constant 0 : index
    %c0_259 = arith.constant 0 : index
    %211 = vector.load %arg5[%c0_255, %c6_256, %c3_257, %c0_258, %c0_259] : memref<1x8x8x2x2xf32, #tpu.memory_space<vmem>>, vector<1x1x1x2x2xf32>
    %212 = vector.shape_cast %211 : vector<1x1x1x2x2xf32> to vector<2x2xf32>
    %213 = vector.shape_cast %210 : vector<2x2xf32> to vector<1x1x1x2x2xf32>
    tpu.vector_store %arg5[%c0_255, %c6_256, %c3_257, %c0_258, %c0_259], %213 {strides = array<i32>} : memref<1x8x8x2x2xf32, #tpu.memory_space<vmem>>, vector<1x1x1x2x2xf32>,
    %214 = vector.extract_strided_slice %5 {offsets = [12, 8], sizes = [2, 2], strides = [1, 1]} : vector<16x16xf32> to vector<2x2xf32>
    %c0_260 = arith.constant 0 : index
    %c6_261 = arith.constant 6 : index
    %c4_262 = arith.constant 4 : index
    %c0_263 = arith.constant 0 : index
    %c0_264 = arith.constant 0 : index
    %215 = vector.load %arg5[%c0_260, %c6_261, %c4_262, %c0_263, %c0_264] : memref<1x8x8x2x2xf32, #tpu.memory_space<vmem>>, vector<1x1x1x2x2xf32>
    %216 = vector.shape_cast %215 : vector<1x1x1x2x2xf32> to vector<2x2xf32>
    %217 = vector.shape_cast %214 : vector<2x2xf32> to vector<1x1x1x2x2xf32>
    tpu.vector_store %arg5[%c0_260, %c6_261, %c4_262, %c0_263, %c0_264], %217 {strides = array<i32>} : memref<1x8x8x2x2xf32, #tpu.memory_space<vmem>>, vector<1x1x1x2x2xf32>,
    %218 = vector.extract_strided_slice %5 {offsets = [12, 10], sizes = [2, 2], strides = [1, 1]} : vector<16x16xf32> to vector<2x2xf32>
    %c0_265 = arith.constant 0 : index
    %c6_266 = arith.constant 6 : index
    %c5_267 = arith.constant 5 : index
    %c0_268 = arith.constant 0 : index
    %c0_269 = arith.constant 0 : index
    %219 = vector.load %arg5[%c0_265, %c6_266, %c5_267, %c0_268, %c0_269] : memref<1x8x8x2x2xf32, #tpu.memory_space<vmem>>, vector<1x1x1x2x2xf32>
    %220 = vector.shape_cast %219 : vector<1x1x1x2x2xf32> to vector<2x2xf32>
    %221 = vector.shape_cast %218 : vector<2x2xf32> to vector<1x1x1x2x2xf32>
    tpu.vector_store %arg5[%c0_265, %c6_266, %c5_267, %c0_268, %c0_269], %221 {strides = array<i32>} : memref<1x8x8x2x2xf32, #tpu.memory_space<vmem>>, vector<1x1x1x2x2xf32>,
    %222 = vector.extract_strided_slice %5 {offsets = [12, 12], sizes = [2, 2], strides = [1, 1]} : vector<16x16xf32> to vector<2x2xf32>
    %c0_270 = arith.constant 0 : index
    %c6_271 = arith.constant 6 : index
    %c6_272 = arith.constant 6 : index
    %c0_273 = arith.constant 0 : index
    %c0_274 = arith.constant 0 : index
    %223 = vector.load %arg5[%c0_270, %c6_271, %c6_272, %c0_273, %c0_274] : memref<1x8x8x2x2xf32, #tpu.memory_space<vmem>>, vector<1x1x1x2x2xf32>
    %224 = vector.shape_cast %223 : vector<1x1x1x2x2xf32> to vector<2x2xf32>
    %225 = vector.shape_cast %222 : vector<2x2xf32> to vector<1x1x1x2x2xf32>
    tpu.vector_store %arg5[%c0_270, %c6_271, %c6_272, %c0_273, %c0_274], %225 {strides = array<i32>} : memref<1x8x8x2x2xf32, #tpu.memory_space<vmem>>, vector<1x1x1x2x2xf32>,
    %226 = vector.extract_strided_slice %5 {offsets = [12, 14], sizes = [2, 2], strides = [1, 1]} : vector<16x16xf32> to vector<2x2xf32>
    %c0_275 = arith.constant 0 : index
    %c6_276 = arith.constant 6 : index
    %c7_277 = arith.constant 7 : index
    %c0_278 = arith.constant 0 : index
    %c0_279 = arith.constant 0 : index
    %227 = vector.load %arg5[%c0_275, %c6_276, %c7_277, %c0_278, %c0_279] : memref<1x8x8x2x2xf32, #tpu.memory_space<vmem>>, vector<1x1x1x2x2xf32>
    %228 = vector.shape_cast %227 : vector<1x1x1x2x2xf32> to vector<2x2xf32>
    %229 = vector.shape_cast %226 : vector<2x2xf32> to vector<1x1x1x2x2xf32>
    tpu.vector_store %arg5[%c0_275, %c6_276, %c7_277, %c0_278, %c0_279], %229 {strides = array<i32>} : memref<1x8x8x2x2xf32, #tpu.memory_space<vmem>>, vector<1x1x1x2x2xf32>,
    %230 = vector.extract_strided_slice %5 {offsets = [14, 0], sizes = [2, 2], strides = [1, 1]} : vector<16x16xf32> to vector<2x2xf32>
    %c0_280 = arith.constant 0 : index
    %c7_281 = arith.constant 7 : index
    %c0_282 = arith.constant 0 : index
    %c0_283 = arith.constant 0 : index
    %c0_284 = arith.constant 0 : index
    %231 = vector.load %arg5[%c0_280, %c7_281, %c0_282, %c0_283, %c0_284] : memref<1x8x8x2x2xf32, #tpu.memory_space<vmem>>, vector<1x1x1x2x2xf32>
    %232 = vector.shape_cast %231 : vector<1x1x1x2x2xf32> to vector<2x2xf32>
    %233 = vector.shape_cast %230 : vector<2x2xf32> to vector<1x1x1x2x2xf32>
    tpu.vector_store %arg5[%c0_280, %c7_281, %c0_282, %c0_283, %c0_284], %233 {strides = array<i32>} : memref<1x8x8x2x2xf32, #tpu.memory_space<vmem>>, vector<1x1x1x2x2xf32>,
    %234 = vector.extract_strided_slice %5 {offsets = [14, 2], sizes = [2, 2], strides = [1, 1]} : vector<16x16xf32> to vector<2x2xf32>
    %c0_285 = arith.constant 0 : index
    %c7_286 = arith.constant 7 : index
    %c1_287 = arith.constant 1 : index
    %c0_288 = arith.constant 0 : index
    %c0_289 = arith.constant 0 : index
    %235 = vector.load %arg5[%c0_285, %c7_286, %c1_287, %c0_288, %c0_289] : memref<1x8x8x2x2xf32, #tpu.memory_space<vmem>>, vector<1x1x1x2x2xf32>
    %236 = vector.shape_cast %235 : vector<1x1x1x2x2xf32> to vector<2x2xf32>
    %237 = vector.shape_cast %234 : vector<2x2xf32> to vector<1x1x1x2x2xf32>
    tpu.vector_store %arg5[%c0_285, %c7_286, %c1_287, %c0_288, %c0_289], %237 {strides = array<i32>} : memref<1x8x8x2x2xf32, #tpu.memory_space<vmem>>, vector<1x1x1x2x2xf32>,
    %238 = vector.extract_strided_slice %5 {offsets = [14, 4], sizes = [2, 2], strides = [1, 1]} : vector<16x16xf32> to vector<2x2xf32>
    %c0_290 = arith.constant 0 : index
    %c7_291 = arith.constant 7 : index
    %c2_292 = arith.constant 2 : index
    %c0_293 = arith.constant 0 : index
    %c0_294 = arith.constant 0 : index
    %239 = vector.load %arg5[%c0_290, %c7_291, %c2_292, %c0_293, %c0_294] : memref<1x8x8x2x2xf32, #tpu.memory_space<vmem>>, vector<1x1x1x2x2xf32>
    %240 = vector.shape_cast %239 : vector<1x1x1x2x2xf32> to vector<2x2xf32>
    %241 = vector.shape_cast %238 : vector<2x2xf32> to vector<1x1x1x2x2xf32>
    tpu.vector_store %arg5[%c0_290, %c7_291, %c2_292, %c0_293, %c0_294], %241 {strides = array<i32>} : memref<1x8x8x2x2xf32, #tpu.memory_space<vmem>>, vector<1x1x1x2x2xf32>,
    %242 = vector.extract_strided_slice %5 {offsets = [14, 6], sizes = [2, 2], strides = [1, 1]} : vector<16x16xf32> to vector<2x2xf32>
    %c0_295 = arith.constant 0 : index
    %c7_296 = arith.constant 7 : index
    %c3_297 = arith.constant 3 : index
    %c0_298 = arith.constant 0 : index
    %c0_299 = arith.constant 0 : index
    %243 = vector.load %arg5[%c0_295, %c7_296, %c3_297, %c0_298, %c0_299] : memref<1x8x8x2x2xf32, #tpu.memory_space<vmem>>, vector<1x1x1x2x2xf32>
    %244 = vector.shape_cast %243 : vector<1x1x1x2x2xf32> to vector<2x2xf32>
    %245 = vector.shape_cast %242 : vector<2x2xf32> to vector<1x1x1x2x2xf32>
    tpu.vector_store %arg5[%c0_295, %c7_296, %c3_297, %c0_298, %c0_299], %245 {strides = array<i32>} : memref<1x8x8x2x2xf32, #tpu.memory_space<vmem>>, vector<1x1x1x2x2xf32>,
    %246 = vector.extract_strided_slice %5 {offsets = [14, 8], sizes = [2, 2], strides = [1, 1]} : vector<16x16xf32> to vector<2x2xf32>
    %c0_300 = arith.constant 0 : index
    %c7_301 = arith.constant 7 : index
    %c4_302 = arith.constant 4 : index
    %c0_303 = arith.constant 0 : index
    %c0_304 = arith.constant 0 : index
    %247 = vector.load %arg5[%c0_300, %c7_301, %c4_302, %c0_303, %c0_304] : memref<1x8x8x2x2xf32, #tpu.memory_space<vmem>>, vector<1x1x1x2x2xf32>
    %248 = vector.shape_cast %247 : vector<1x1x1x2x2xf32> to vector<2x2xf32>
    %249 = vector.shape_cast %246 : vector<2x2xf32> to vector<1x1x1x2x2xf32>
    tpu.vector_store %arg5[%c0_300, %c7_301, %c4_302, %c0_303, %c0_304], %249 {strides = array<i32>} : memref<1x8x8x2x2xf32, #tpu.memory_space<vmem>>, vector<1x1x1x2x2xf32>,
    %250 = vector.extract_strided_slice %5 {offsets = [14, 10], sizes = [2, 2], strides = [1, 1]} : vector<16x16xf32> to vector<2x2xf32>
    %c0_305 = arith.constant 0 : index
    %c7_306 = arith.constant 7 : index
    %c5_307 = arith.constant 5 : index
    %c0_308 = arith.constant 0 : index
    %c0_309 = arith.constant 0 : index
    %251 = vector.load %arg5[%c0_305, %c7_306, %c5_307, %c0_308, %c0_309] : memref<1x8x8x2x2xf32, #tpu.memory_space<vmem>>, vector<1x1x1x2x2xf32>
    %252 = vector.shape_cast %251 : vector<1x1x1x2x2xf32> to vector<2x2xf32>
    %253 = vector.shape_cast %250 : vector<2x2xf32> to vector<1x1x1x2x2xf32>
    tpu.vector_store %arg5[%c0_305, %c7_306, %c5_307, %c0_308, %c0_309], %253 {strides = array<i32>} : memref<1x8x8x2x2xf32, #tpu.memory_space<vmem>>, vector<1x1x1x2x2xf32>,
    %254 = vector.extract_strided_slice %5 {offsets = [14, 12], sizes = [2, 2], strides = [1, 1]} : vector<16x16xf32> to vector<2x2xf32>
    %c0_310 = arith.constant 0 : index
    %c7_311 = arith.constant 7 : index
    %c6_312 = arith.constant 6 : index
    %c0_313 = arith.constant 0 : index
    %c0_314 = arith.constant 0 : index
    %255 = vector.load %arg5[%c0_310, %c7_311, %c6_312, %c0_313, %c0_314] : memref<1x8x8x2x2xf32, #tpu.memory_space<vmem>>, vector<1x1x1x2x2xf32>
    %256 = vector.shape_cast %255 : vector<1x1x1x2x2xf32> to vector<2x2xf32>
    %257 = vector.shape_cast %254 : vector<2x2xf32> to vector<1x1x1x2x2xf32>
    tpu.vector_store %arg5[%c0_310, %c7_311, %c6_312, %c0_313, %c0_314], %257 {strides = array<i32>} : memref<1x8x8x2x2xf32, #tpu.memory_space<vmem>>, vector<1x1x1x2x2xf32>,
    %258 = vector.extract_strided_slice %5 {offsets = [14, 14], sizes = [2, 2], strides = [1, 1]} : vector<16x16xf32> to vector<2x2xf32>
    %c0_315 = arith.constant 0 : index
    %c7_316 = arith.constant 7 : index
    %c7_317 = arith.constant 7 : index
    %c0_318 = arith.constant 0 : index
    %c0_319 = arith.constant 0 : index
    %259 = vector.load %arg5[%c0_315, %c7_316, %c7_317, %c0_318, %c0_319] : memref<1x8x8x2x2xf32, #tpu.memory_space<vmem>>, vector<1x1x1x2x2xf32>
    %260 = vector.shape_cast %259 : vector<1x1x1x2x2xf32> to vector<2x2xf32>
    %261 = vector.shape_cast %258 : vector<2x2xf32> to vector<1x1x1x2x2xf32>
    tpu.vector_store %arg5[%c0_315, %c7_316, %c7_317, %c0_318, %c0_319], %261 {strides = array<i32>} : memref<1x8x8x2x2xf32, #tpu.memory_space<vmem>>, vector<1x1x1x2x2xf32>,
    return
  }
  func.func @transform_0(%arg0: i32, %arg1: i32) -> (i32, i32, i32) {
    %c0_i32 = arith.constant 0 : i32
    %c0_i32_0 = arith.constant 0 : i32
    return %arg0, %arg1, %c0_i32 : i32, i32, i32
  }
  func.func @transform_1(%arg0: i32, %arg1: i32) -> (i32, i32) {
    %c0_i32 = arith.constant 0 : i32
    %c0_i32_0 = arith.constant 0 : i32
    %c0_i32_1 = arith.constant 0 : i32
    return %c0_i32, %c0_i32_0 : i32, i32
  }
  func.func @transform_2(%arg0: i32, %arg1: i32) -> (i32, i32) {
    %c0_i32 = arith.constant 0 : i32
    %c0_i32_0 = arith.constant 0 : i32
    %c0_i32_1 = arith.constant 0 : i32
    return %c0_i32, %c0_i32_0 : i32, i32
  }
  func.func @transform_3(%arg0: i32, %arg1: i32) -> (i32, i32, i32, i32, i32) {
    %c0_i32 = arith.constant 0 : i32
    %c0_i32_0 = arith.constant 0 : i32
    %c0_i32_1 = arith.constant 0 : i32
    %c0_i32_2 = arith.constant 0 : i32
    return %arg0, %c0_i32, %c0_i32_0, %arg1, %c0_i32_1 : i32, i32, i32, i32, i32
  }
}

</mosaic_0001>

<llo_original>
// kernel: tpu_custom_call.1
$region0: #{tpu_custom_call.1}
  #allocation0 [shape = 'u32[]', space=smem, size = 0x4, offset = 0x4, fixed_abs, tag = 'smem constant byte address 0x4 - core index']
  #allocation1 [shape = 'u32[144,128]{1,0:T(1,128)}', space=vmem, size = 0x12000, scoped, tag = 'internal scratch']
  %s0 = inlined_call_operand.hbm [shape: f32[2,16,16], index: 0, kind: input, shape index: {}]
  %s1 = inlined_call_operand.hbm [shape: f32[16,16], index: 1, kind: input, shape index: {}]
  %s2 = inlined_call_operand.hbm [shape: f32[16,16], index: 2, kind: input, shape index: {}]
  %s3 = inlined_call_operand.vmem [shape: f32[2,8,8,2,2], index: 3, kind: output, shape index: {}]
  %s4 = sld [smem:[#allocation0]]
  $region57: #{tpu_custom_call.1} parent=0
    _
  %s6 = ssub.s32 1, %s4
  %s7 = scalar_select 0, %s6, %s4
  $region1: #{tpu_custom_call.1} parent=0
    #allocation2 [shape = 'u8[16384]{0}', space=vmem, size = 0x4000, scoped, tag = 'input window, operand 0']
    #allocation3 [shape = 's32[2]{0}', space=sflag, size = 0x8, scoped, tag = 'scoped memory for tpu_custom_call.1']
    #allocation4 [shape = 'u8[8192]{0}', space=vmem, size = 0x2000, scoped, tag = 'input window, operand 1, single buffered']
    #allocation5 [shape = 's32[1]{0}', space=sflag, size = 0x4, scoped, tag = 'scoped memory for tpu_custom_call.1']
    #allocation6 [shape = 'u8[8192]{0}', space=vmem, size = 0x2000, scoped, tag = 'input window, operand 2, single buffered']
    %8 = vsyncpa [#allocation3], 0
    %s9 = scalar_lea.sflag [#allocation3], 1
    %10 = vsyncpa %s9, 0
    %11 = vsyncpa [#allocation5], 0
    loop: start=0, step=1, limit=4
    $region2: #{tpu_custom_call.1} parent=1 // loop_pre_header
      _
    $region3: #{tpu_custom_call.1} parent=1 // loop_header
      %s13 = sphi 0, %s17
      %p14 = scmp.ge.s32.totalorder %s13, 4
      %s20 = sphi 0, %s32
      %s21 = sphi 0, %s28
      %s22 = sphi 0, %s20
      %s23 = sphi 0, %s21
      %s24 = sphi 0, %s22
      %s25 = sphi 0, %s23
      %s37 = sphi 0, %s39
      %s40 = sphi 0, %s37
      %s41 = sphi 0, %s40
      %s57 = sphi 0, %s41
      %s61 = sphi 0, %s61
      %s63 = sphi 0, %s61
      %s64 = sphi 0, %s63
      %s78 = sphi 0, %s64
      %s82 = sphi 0, %s82
      %s84 = sphi 0, %s82
      %s85 = sphi 0, %s84
      %s99 = sphi 0, %s85
      %s107 = sphi 0, %s109
      %s110 = sphi 0, %s107
      %s111 = sphi 0, %s110
      %s127 = sphi 0, %s111
    $region4: #{tpu_custom_call.1} parent=1 // loop_header_branch
      %16 = sbr.rel (%p14) target = $region8
    $region5: #{tpu_custom_call.1} parent=1 // loop_body
      %s18 = ssub.s32 %s13, 1
      %s19 = ssub.s32 %s13, 2
      %s26 = sadd.s32 1, %s21
      %p27 = scmp.ge.s32.totalorder %s26, 1
      %s28 = scalar_select %p27, 0, %s26
      %s29 = sadd.s32 1, %s20
      %s30 = scalar_select %p27, %s29, %s20
      %p31 = scmp.ge.s32.totalorder %s30, 2
      %s32 = scalar_select %p31, 0, %s30
      %s33 = ssub.s32 %s20, %s32
      %s34 = ssub.s32 %s21, %s28
      %s35 = sor.u32 %s33, %s34
      %p36 = scmp.eq.s32.totalorder %s35, 0
      %s38 = sadd.s32 %s37, 1
      %s39 = scalar_select %p36, %s37, %s38
      %p42 = pneg %p36
      %p43 = scmp.eq.s32.totalorder %s13, 1
      %p44 = por %p42, %p43
      %p45 = scmp.ne.s32.totalorder %s37, %s40
      %p46 = scmp.eq.s32.totalorder %s13, 0
      %p47 = por %p45, %p46
      %p48 = scmp.ne.s32.totalorder %s37, %s40
      %p49 = scmp.eq.s32.totalorder %s18, 1
      %p50 = por %p48, %p49
      %p51 = scmp.ne.s32.totalorder %s40, %s41
      %p52 = scmp.eq.s32.totalorder %s18, 0
      %p53 = por %p51, %p52
      %p54 = scmp.ne.s32.totalorder %s40, %s41
      %p55 = scmp.eq.s32.totalorder %s19, 1
      %p56 = por %p54, %p55
      %p58 = scmp.ne.s32.totalorder %s41, %s57
      %p59 = scmp.eq.s32.totalorder %s19, 0
      %p60 = por %p58, %p59
      %s62 = sadd.s32 %s61, 1
      %p65 = scmp.eq.s32.totalorder %s13, 1
      %p66 = scmp.ne.s32.totalorder %s61, %s63
      %p67 = scmp.eq.s32.totalorder %s13, 0
      %p68 = por %p66, %p67
      %p69 = scmp.ne.s32.totalorder %s61, %s63
      %p70 = scmp.eq.s32.totalorder %s18, 1
      %p71 = por %p69, %p70
      %p72 = scmp.ne.s32.totalorder %s63, %s64
      %p73 = scmp.eq.s32.totalorder %s18, 0
      %p74 = por %p72, %p73
      %p75 = scmp.ne.s32.totalorder %s63, %s64
      %p76 = scmp.eq.s32.totalorder %s19, 1
      %p77 = por %p75, %p76
      %p79 = scmp.ne.s32.totalorder %s64, %s78
      %p80 = scmp.eq.s32.totalorder %s19, 0
      %p81 = por %p79, %p80
      %s83 = sadd.s32 %s82, 1
      %p86 = scmp.eq.s32.totalorder %s13, 1
      %p87 = scmp.ne.s32.totalorder %s82, %s84
      %p88 = scmp.eq.s32.totalorder %s13, 0
      %p89 = por %p87, %p88
      %p90 = scmp.ne.s32.totalorder %s82, %s84
      %p91 = scmp.eq.s32.totalorder %s18, 1
      %p92 = por %p90, %p91
      %p93 = scmp.ne.s32.totalorder %s84, %s85
      %p94 = scmp.eq.s32.totalorder %s18, 0
      %p95 = por %p93, %p94
      %p96 = scmp.ne.s32.totalorder %s84, %s85
      %p97 = scmp.eq.s32.totalorder %s19, 1
      %p98 = por %p96, %p97
      %p100 = scmp.ne.s32.totalorder %s85, %s99
      %p101 = scmp.eq.s32.totalorder %s19, 0
      %p102 = por %p100, %p101
      %s103 = ssub.s32 %s20, %s32
      %s104 = ssub.s32 %s21, %s28
      %s105 = sor.u32 %s103, %s104
      %p106 = scmp.eq.s32.totalorder %s105, 0
      %s108 = sadd.s32 %s107, 1
      %s109 = scalar_select %p106, %s107, %s108
      %p112 = pneg %p106
      %p113 = scmp.eq.s32.totalorder %s13, 1
      %p114 = por %p112, %p113
      %p115 = scmp.ne.s32.totalorder %s107, %s110
      %p116 = scmp.eq.s32.totalorder %s13, 0
      %p117 = por %p115, %p116
      %p118 = scmp.ne.s32.totalorder %s107, %s110
      %p119 = scmp.eq.s32.totalorder %s18, 1
      %p120 = por %p118, %p119
      %p121 = scmp.ne.s32.totalorder %s110, %s111
      %p122 = scmp.eq.s32.totalorder %s18, 0
      %p123 = por %p121, %p122
      %p124 = scmp.ne.s32.totalorder %s110, %s111
      %p125 = scmp.eq.s32.totalorder %s19, 1
      %p126 = por %p124, %p125
      %p128 = scmp.ne.s32.totalorder %s111, %s127
      %p129 = scmp.eq.s32.totalorder %s19, 0
      %p130 = por %p128, %p129
      %p131 = scmp.le.s32.totalorder 1, %s13
      %p132 = scmp.lt.s32.totalorder %s13, 3
      %p133 = pnand %p131, %p132
      %p134 = pneg %p133
      // Predicated region
      $region9: #{tpu_custom_call.1} parent=5 // pred_check
        _
      $region10: #{tpu_custom_call.1} parent=5 // pred_check_branch
        %136 = sbr.rel (%p133) target = $region12
      $region11: #{tpu_custom_call.1} parent=5 // pred_region
        %s137 = ssub.s32 %s13, 1
        // Predicated region
        $region13: #{tpu_custom_call.1} parent=11 // pred_check
          %p138 = pneg %p74
        $region14: #{tpu_custom_call.1} parent=11 // pred_check_branch
          %140 = sbr.rel (%p138) target = $region16
        $region15: #{tpu_custom_call.1} parent=11 // pred_region
          %s142 = ssub.s32 256, 256
          %143 = vsyncadd [#allocation5], %s142
          %s144 = sshll.u32 [#allocation4], 4
          %s145 = int_to_ptr.vmem [resolvable:$true] %s144
          %150 = dma.hbm_to_vmem [thread:$0]  %s1, 256, %s145, [#allocation5], 128, 128, 8
        $region16: #{tpu_custom_call.1} parent=11 // pred_fallthru
          _
        // Predicated region
        $region17: #{tpu_custom_call.1} parent=11 // pred_check
          %p151 = pneg %p95
        $region18: #{tpu_custom_call.1} parent=11 // pred_check_branch
          %153 = sbr.rel (%p151) target = $region20
        $region19: #{tpu_custom_call.1} parent=11 // pred_region
          %s155 = ssub.s32 256, 256
          %156 = vsyncadd [#allocation5], %s155
          %s157 = sshll.u32 [#allocation6], 4
          %s158 = int_to_ptr.vmem [resolvable:$true] %s157
          %163 = dma.hbm_to_vmem [thread:$0]  %s2, 256, %s158, [#allocation5], 128, 128, 8
        $region20: #{tpu_custom_call.1} parent=11 // pred_fallthru
          _
      $region12: #{tpu_custom_call.1} parent=5 // pred_fallthru
        _
      %p164 = scmp.lt.s32.totalorder %s13, 2
      // Predicated region
      $region21: #{tpu_custom_call.1} parent=5 // pred_check
        %p165 = pneg %p164
      $region22: #{tpu_custom_call.1} parent=5 // pred_check_branch
        %167 = sbr.rel (%p165) target = $region24
      $region23: #{tpu_custom_call.1} parent=5 // pred_region
        // Predicated region
        $region25: #{tpu_custom_call.1} parent=23 // pred_check
          %p168 = pneg %p47
        $region26: #{tpu_custom_call.1} parent=23 // pred_check_branch
          %170 = sbr.rel (%p168) target = $region28
        $region27: #{tpu_custom_call.1} parent=23 // pred_region
          %s171 = sand.u32 %s37, 1
          %s172 = scalar_lea.sflag [#allocation3], %s171
          %s173 = sand.u32 %s37, 1
          %s174 = smul.addr %s173, 16
          %s175 = scalar_lea.vmem [#allocation2], %s174
          %s176 = smul.u32 2, %s21
          %s178 = ssub.s32 256, 256
          %179 = vsyncadd %s172, %s178
          %s180 = smul.addr %s20, 2
          %s181 = sadd.s32 %s176, %s180
          %s182 = smul.addr %s181, 128
          %s183 = scalar_lea.hbm %s0, %s182
          %s184 = sshll.u32 %s175, 4
          %s185 = int_to_ptr.vmem [resolvable:$true] %s184
          %190 = dma.hbm_to_vmem [thread:$0]  %s183, 256, %s185, %s172, 128, 128, 8
        $region28: #{tpu_custom_call.1} parent=23 // pred_fallthru
          _
      $region24: #{tpu_custom_call.1} parent=5 // pred_fallthru
        _
      %p191 = scmp.le.s32.totalorder 1, %s13
      %p192 = scmp.lt.s32.totalorder %s13, 3
      %p193 = pnand %p191, %p192
      %p194 = pneg %p193
      // Predicated region
      $region29: #{tpu_custom_call.1} parent=5 // pred_check
        _
      $region30: #{tpu_custom_call.1} parent=5 // pred_check_branch
        %196 = sbr.rel (%p193) target = $region32
      $region31: #{tpu_custom_call.1} parent=5 // pred_region
        %s197 = ssub.s32 %s13, 1
        %s198 = sand.u32 %s40, 1
        %s199 = scalar_lea.sflag [#allocation3], %s198
        %s200 = sand.u32 %s40, 1
        %s201 = smul.addr %s200, 16
        %s202 = scalar_lea.vmem [#allocation2], %s201
        // Predicated region
        $region33: #{tpu_custom_call.1} parent=31 // pred_check
          %p203 = pneg %p53
        $region34: #{tpu_custom_call.1} parent=31 // pred_check_branch
          %205 = sbr.rel (%p203) target = $region36
        $region35: #{tpu_custom_call.1} parent=31 // pred_region
          %206 = dma.done %s199, 256
        $region36: #{tpu_custom_call.1} parent=31 // pred_fallthru
          _
        // Predicated region
        $region37: #{tpu_custom_call.1} parent=31 // pred_check
          %p207 = pneg %p74
        $region38: #{tpu_custom_call.1} parent=31 // pred_check_branch
          %209 = sbr.rel (%p207) target = $region40
        $region39: #{tpu_custom_call.1} parent=31 // pred_region
          %210 = dma.done [#allocation5], 256
        $region40: #{tpu_custom_call.1} parent=31 // pred_fallthru
          _
        // Predicated region
        $region41: #{tpu_custom_call.1} parent=31 // pred_check
          %p211 = pneg %p95
        $region42: #{tpu_custom_call.1} parent=31 // pred_check_branch
          %213 = sbr.rel (%p211) target = $region44
        $region43: #{tpu_custom_call.1} parent=31 // pred_region
          %214 = dma.done [#allocation5], 256
        $region44: #{tpu_custom_call.1} parent=31 // pred_fallthru
          _
        %s215 = sand.u32 %s40, 1
        %s216 = scalar_lea.sflag [#allocation3], %s215
        %s217 = sand.u32 %s40, 1
        %s218 = smul.addr %s217, 16
        %s219 = scalar_lea.vmem [#allocation2], %s218
        %p220 = pneg %p53
        %p221 = pneg %p50
        %p222 = pneg %p74
        %p223 = pneg %p71
        %p224 = pneg %p95
        %p225 = pneg %p92
        %p226 = pneg %p123
        %p227 = pneg %p120
        %p228 = scmp.lt.s32.totalorder %s22, 1
        %s229 = scalar_select %p228, %s22, 1
        %p230 = scmp.lt.s32.totalorder %s23, 0
        %s231 = scalar_select %p230, %s23, 0
        %s232 = smul.addr %s229, 64
        %s233 = sadd.s32 %s231, %s232
        %s234 = smul.addr %s233, 2
        %s235 = scalar_lea.vmem %s3, %s234
        %s236 = smul.u32 2, %s23
        %p237 = scmp.lt.s32.totalorder %s22, 1
        %s238 = scalar_select %p237, %s22, 1
        %p239 = scmp.lt.s32.totalorder %s23, 0
        %s240 = scalar_select %p239, %s23, 0
        %s241 = smul.addr %s238, 64
        %s242 = sadd.s32 %s240, %s241
        %s243 = smul.addr %s242, 2
        %s244 = scalar_lea.vmem %s3, %s243
        %v245 = vld [vmem:[%s202] sm:$0xff]
        %v246 = vld [vmem:[%s202 + $0x8] sm:$0xff]
        %v247 = vld [vmem:[#allocation4] sm:$0xff]
        %v248 = vld [vmem:[#allocation4 + $0x8] sm:$0xff]
        %vm249 = vcmask 130048
        %v251 = vsel %vm249, %v247, 0
        %v254 = vsel %vm249, %v248, 0
        %256 = vmatprep.subr.mxu0 0.0
        %257 = vmatpush1.msra.mxu0 %v245
        %258 = vmatprep.subr.mxu0 0.0
        %259 = vmatpush1.msra.mxu0 %v246
        %260 = vmatprep.subr.mxu0 0.0
        %261 = vmatpush1.msra.mxu0 0.0
        %262 = vmatprep.subr.mxu0 0.0
        %263 = vmatpush1.msra.mxu0 0.0
        %264 = vmatprep.subr.mxu0 0.0
        %265 = vmatpush1.msra.mxu0 0.0
        %266 = vmatprep.subr.mxu0 0.0
        %267 = vmatpush1.msra.mxu0 0.0
        %268 = vmatprep.subr.mxu0 0.0
        %269 = vmatpush1.msra.mxu0 0.0
        %270 = vmatprep.subr.mxu0 0.0
        %271 = vmatpush1.msra.mxu0 0.0
        %272 = vmatprep.subr.mxu0 0.0
        %273 = vmatpush1.msra.mxu0 0.0
        %274 = vmatprep.subr.mxu0 0.0
        %275 = vmatpush1.msra.mxu0 0.0
        %276 = vmatprep.subr.mxu0 0.0
        %277 = vmatpush1.msra.mxu0 0.0
        %278 = vmatprep.subr.mxu0 0.0
        %279 = vmatpush1.msra.mxu0 0.0
        %280 = vmatprep.subr.mxu0 0.0
        %281 = vmatpush1.msra.mxu0 0.0
        %282 = vmatprep.subr.mxu0 0.0
        %283 = vmatpush1.msra.mxu0 0.0
        %284 = vmatprep.subr.mxu0 0.0
        %285 = vmatpush1.msra.mxu0 0.0
        %286 = vmatprep.subr.mxu0 0.0
        %287 = vmatpush1.msra.mxu0 0.0
        %288 = vmatprep.subr.mxu0 0.0
        %289 = vmatpush1.msra.mxu0 0.0
        %290 = vmatprep.subr.mxu0 0.0
        %291 = vmatpush1.msra.mxu0 0.0
        %292 = vmatprep.subr.mxu0 0.0
        %293 = vmatpush1.msra.mxu0 0.0
        %294 = vmatprep.subr.mxu0 0.0
        %295 = vmatpush1.msra.mxu0 0.0
        %296 = vmatprep.subr.mxu0 0.0
        %297 = vmatpush1.msra.mxu0 0.0
        %298 = vmatprep.subr.mxu0 0.0
        %299 = vmatpush1.msra.mxu0 0.0
        %300 = vmatprep.subr.mxu0 0.0
        %301 = vmatpush1.msra.mxu0 0.0
        %302 = vmatprep.subr.mxu0 0.0
        %303 = vmatpush1.msra.mxu0 0.0
        %304 = vmatprep.subr.mxu0 0.0
        %305 = vmatpush1.msra.mxu0 0.0
        %306 = vmatprep.subr.mxu0 0.0
        %307 = vmatpush1.msra.mxu0 0.0
        %308 = vmatprep.subr.mxu0 0.0
        %309 = vmatpush1.msra.mxu0 0.0
        %310 = vmatprep.subr.mxu0 0.0
        %311 = vmatpush1.msra.mxu0 0.0
        %312 = vmatprep.subr.mxu0 0.0
        %313 = vmatpush1.msra.mxu0 0.0
        %314 = vmatprep.subr.mxu0 0.0
        %315 = vmatpush1.msra.mxu0 0.0
        %316 = vmatprep.subr.mxu0 0.0
        %317 = vmatpush1.msra.mxu0 0.0
        %318 = vmatprep.subr.mxu0 0.0
        %319 = vmatpush1.msra.mxu0 0.0
        %320 = vmatprep.mubr.f32.mxu0 0.0
        %321 = vmatmul.mubr.f32.gmra.mrb[0].mxu0 %v251
        %v322 = vpop.f32.mrb[0].mxu0
        %v323 = vadd.f32 0.0, %v322
        %v324 = vpop.f32.mrb[0].mxu0
        %325 = vmatprep.mubr.f32.mxu0 0.0
        %326 = vmatmul.mubr.f32.gmra.mrb[0].mxu0 %v254
        %v327 = vpop.f32.mrb[0].mxu0
        %v328 = vadd.f32 0.0, %v327
        %v329 = vpop.f32.mrb[0].mxu0
        %330 = vdwg.mxu0
        %v331 = vld [vmem:[#allocation6] sm:$0xff]
        %v332 = vld [vmem:[#allocation6 + $0x8] sm:$0xff]
        %v334 = vsel %vm249, %v323, 0
        %v337 = vsel %vm249, %v328, 0
        %339 = vmatprep.subr.mxu0 0.0
        %340 = vmatpush1.msra.mxu0 %v331
        %341 = vmatprep.subr.mxu0 0.0
        %342 = vmatpush1.msra.mxu0 %v332
        %343 = vmatprep.subr.mxu0 0.0
        %344 = vmatpush1.msra.mxu0 0.0
        %345 = vmatprep.subr.mxu0 0.0
        %346 = vmatpush1.msra.mxu0 0.0
        %347 = vmatprep.subr.mxu0 0.0
        %348 = vmatpush1.msra.mxu0 0.0
        %349 = vmatprep.subr.mxu0 0.0
        %350 = vmatpush1.msra.mxu0 0.0
        %351 = vmatprep.subr.mxu0 0.0
        %352 = vmatpush1.msra.mxu0 0.0
        %353 = vmatprep.subr.mxu0 0.0
        %354 = vmatpush1.msra.mxu0 0.0
        %355 = vmatprep.subr.mxu0 0.0
        %356 = vmatpush1.msra.mxu0 0.0
        %357 = vmatprep.subr.mxu0 0.0
        %358 = vmatpush1.msra.mxu0 0.0
        %359 = vmatprep.subr.mxu0 0.0
        %360 = vmatpush1.msra.mxu0 0.0
        %361 = vmatprep.subr.mxu0 0.0
        %362 = vmatpush1.msra.mxu0 0.0
        %363 = vmatprep.subr.mxu0 0.0
        %364 = vmatpush1.msra.mxu0 0.0
        %365 = vmatprep.subr.mxu0 0.0
        %366 = vmatpush1.msra.mxu0 0.0
        %367 = vmatprep.subr.mxu0 0.0
        %368 = vmatpush1.msra.mxu0 0.0
        %369 = vmatprep.subr.mxu0 0.0
        %370 = vmatpush1.msra.mxu0 0.0
        %371 = vmatprep.subr.mxu0 0.0
        %372 = vmatpush1.msra.mxu0 0.0
        %373 = vmatprep.subr.mxu0 0.0
        %374 = vmatpush1.msra.mxu0 0.0
        %375 = vmatprep.subr.mxu0 0.0
        %376 = vmatpush1.msra.mxu0 0.0
        %377 = vmatprep.subr.mxu0 0.0
        %378 = vmatpush1.msra.mxu0 0.0
        %379 = vmatprep.subr.mxu0 0.0
        %380 = vmatpush1.msra.mxu0 0.0
        %381 = vmatprep.subr.mxu0 0.0
        %382 = vmatpush1.msra.mxu0 0.0
        %383 = vmatprep.subr.mxu0 0.0
        %384 = vmatpush1.msra.mxu0 0.0
        %385 = vmatprep.subr.mxu0 0.0
        %386 = vmatpush1.msra.mxu0 0.0
        %387 = vmatprep.subr.mxu0 0.0
        %388 = vmatpush1.msra.mxu0 0.0
        %389 = vmatprep.subr.mxu0 0.0
        %390 = vmatpush1.msra.mxu0 0.0
        %391 = vmatprep.subr.mxu0 0.0
        %392 = vmatpush1.msra.mxu0 0.0
        %393 = vmatprep.subr.mxu0 0.0
        %394 = vmatpush1.msra.mxu0 0.0
        %395 = vmatprep.subr.mxu0 0.0
        %396 = vmatpush1.msra.mxu0 0.0
        %397 = vmatprep.subr.mxu0 0.0
        %398 = vmatpush1.msra.mxu0 0.0
        %399 = vmatprep.subr.mxu0 0.0
        %400 = vmatpush1.msra.mxu0 0.0
        %401 = vmatprep.subr.mxu0 0.0
        %402 = vmatpush1.msra.mxu0 0.0
        %403 = vmatprep.mubr.f32.mxu0 0.0
        %404 = vmatmul.mubr.f32.gmra.mrb[0].mxu0 %v334
        %v405 = vpop.f32.mrb[0].mxu0
        %v406 = vadd.f32 0.0, %v405
        %v407 = vpop.f32.mrb[0].mxu0
        %408 = vmatprep.mubr.f32.mxu0 0.0
        %409 = vmatmul.mubr.f32.gmra.mrb[0].mxu0 %v337
        %v410 = vpop.f32.mrb[0].mxu0
        %v411 = vadd.f32 0.0, %v410
        %v412 = vpop.f32.mrb[0].mxu0
        %413 = vdwg.mxu0
        %vm414 = vcmask 9216
        %415 = vst.msk [vmem:[%s244] sm:$0x3] %vm414, %v406
        %417 = vrot.lane.b32.xlu0 %v406, 126
        %v418 = vpop.permute.xlu0 %417
        %s420 = scalar_lea.vmem %s244, 2
        %421 = vst.msk [vmem:[%s420] sm:$0x3] %vm414, %v418
        %422 = vrot.lane.b32.xlu0 %v406, 124
        %v423 = vpop.permute.xlu0 %422
        %s425 = scalar_lea.vmem %s244, 4
        %426 = vst.msk [vmem:[%s425] sm:$0x3] %vm414, %v423
        %427 = vrot.lane.b32.xlu0 %v406, 122
        %v428 = vpop.permute.xlu0 %427
        %s430 = scalar_lea.vmem %s244, 6
        %431 = vst.msk [vmem:[%s430] sm:$0x3] %vm414, %v428
        %432 = vrot.lane.b32.xlu0 %v406, 120
        %v433 = vpop.permute.xlu0 %432
        %s435 = scalar_lea.vmem %s244, 8
        %436 = vst.msk [vmem:[%s435] sm:$0x3] %vm414, %v433
        %437 = vrot.lane.b32.xlu0 %v406, 118
        %v438 = vpop.permute.xlu0 %437
        %s440 = scalar_lea.vmem %s244, 10
        %441 = vst.msk [vmem:[%s440] sm:$0x3] %vm414, %v438
        %442 = vrot.lane.b32.xlu0 %v406, 116
        %v443 = vpop.permute.xlu0 %442
        %s445 = scalar_lea.vmem %s244, 12
        %446 = vst.msk [vmem:[%s445] sm:$0x3] %vm414, %v443
        %447 = vrot.lane.b32.xlu0 %v406, 114
        %v448 = vpop.permute.xlu0 %447
        %s450 = scalar_lea.vmem %s244, 14
        %451 = vst.msk [vmem:[%s450] sm:$0x3] %vm414, %v448
        %s452 = scalar_lea.vmem %s244, 16
        %vm453 = vcmask 11266
        %454 = vst.msk [vmem:[%s452 - $0x2] sm:$0xc] %vm453, %v406
        %s455 = scalar_lea.vmem %s244, 18
        %456 = vst.msk [vmem:[%s455 - $0x2] sm:$0xc] %vm453, %v418
        %s457 = scalar_lea.vmem %s244, 20
        %458 = vst.msk [vmem:[%s457 - $0x2] sm:$0xc] %vm453, %v423
        %s459 = scalar_lea.vmem %s244, 22
        %460 = vst.msk [vmem:[%s459 - $0x2] sm:$0xc] %vm453, %v428
        %s461 = scalar_lea.vmem %s244, 24
        %462 = vst.msk [vmem:[%s461 - $0x2] sm:$0xc] %vm453, %v433
        %s463 = scalar_lea.vmem %s244, 26
        %464 = vst.msk [vmem:[%s463 - $0x2] sm:$0xc] %vm453, %v438
        %s465 = scalar_lea.vmem %s244, 28
        %466 = vst.msk [vmem:[%s465 - $0x2] sm:$0xc] %vm453, %v443
        %s467 = scalar_lea.vmem %s244, 30
        %468 = vst.msk [vmem:[%s467 - $0x2] sm:$0xc] %vm453, %v448
        %s469 = scalar_lea.vmem %s244, 32
        %vm470 = vcmask 13316
        %471 = vst.msk [vmem:[%s469 - $0x4] sm:$0x30] %vm470, %v406
        %s472 = scalar_lea.vmem %s244, 34
        %473 = vst.msk [vmem:[%s472 - $0x4] sm:$0x30] %vm470, %v418
        %s474 = scalar_lea.vmem %s244, 36
        %475 = vst.msk [vmem:[%s474 - $0x4] sm:$0x30] %vm470, %v423
        %s476 = scalar_lea.vmem %s244, 38
        %477 = vst.msk [vmem:[%s476 - $0x4] sm:$0x30] %vm470, %v428
        %s478 = scalar_lea.vmem %s244, 40
        %479 = vst.msk [vmem:[%s478 - $0x4] sm:$0x30] %vm470, %v433
        %s480 = scalar_lea.vmem %s244, 42
        %481 = vst.msk [vmem:[%s480 - $0x4] sm:$0x30] %vm470, %v438
        %s482 = scalar_lea.vmem %s244, 44
        %483 = vst.msk [vmem:[%s482 - $0x4] sm:$0x30] %vm470, %v443
        %s484 = scalar_lea.vmem %s244, 46
        %485 = vst.msk [vmem:[%s484 - $0x4] sm:$0x30] %vm470, %v448
        %s486 = scalar_lea.vmem %s244, 48
        %vm487 = vcmask 15366
        %488 = vst.msk [vmem:[%s486 - $0x6] sm:$0xc0] %vm487, %v406
        %s489 = scalar_lea.vmem %s244, 50
        %490 = vst.msk [vmem:[%s489 - $0x6] sm:$0xc0] %vm487, %v418
        %s491 = scalar_lea.vmem %s244, 52
        %492 = vst.msk [vmem:[%s491 - $0x6] sm:$0xc0] %vm487, %v423
        %s493 = scalar_lea.vmem %s244, 54
        %494 = vst.msk [vmem:[%s493 - $0x6] sm:$0xc0] %vm487, %v428
        %s495 = scalar_lea.vmem %s244, 56
        %496 = vst.msk [vmem:[%s495 - $0x6] sm:$0xc0] %vm487, %v433
        %s497 = scalar_lea.vmem %s244, 58
        %498 = vst.msk [vmem:[%s497 - $0x6] sm:$0xc0] %vm487, %v438
        %s499 = scalar_lea.vmem %s244, 60
        %500 = vst.msk [vmem:[%s499 - $0x6] sm:$0xc0] %vm487, %v443
        %s501 = scalar_lea.vmem %s244, 62
        %502 = vst.msk [vmem:[%s501 - $0x6] sm:$0xc0] %vm487, %v448
        %s503 = scalar_lea.vmem %s244, 64
        %504 = vst.msk [vmem:[%s503] sm:$0x3] %vm414, %v411
        %506 = vrot.lane.b32.xlu0 %v411, 126
        %v507 = vpop.permute.xlu0 %506
        %s509 = scalar_lea.vmem %s244, 66
        %510 = vst.msk [vmem:[%s509] sm:$0x3] %vm414, %v507
        %511 = vrot.lane.b32.xlu0 %v411, 124
        %v512 = vpop.permute.xlu0 %511
        %s514 = scalar_lea.vmem %s244, 68
        %515 = vst.msk [vmem:[%s514] sm:$0x3] %vm414, %v512
        %516 = vrot.lane.b32.xlu0 %v411, 122
        %v517 = vpop.permute.xlu0 %516
        %s519 = scalar_lea.vmem %s244, 70
        %520 = vst.msk [vmem:[%s519] sm:$0x3] %vm414, %v517
        %521 = vrot.lane.b32.xlu0 %v411, 120
        %v522 = vpop.permute.xlu0 %521
        %s524 = scalar_lea.vmem %s244, 72
        %525 = vst.msk [vmem:[%s524] sm:$0x3] %vm414, %v522
        %526 = vrot.lane.b32.xlu0 %v411, 118
        %v527 = vpop.permute.xlu0 %526
        %s529 = scalar_lea.vmem %s244, 74
        %530 = vst.msk [vmem:[%s529] sm:$0x3] %vm414, %v527
        %531 = vrot.lane.b32.xlu0 %v411, 116
        %v532 = vpop.permute.xlu0 %531
        %s534 = scalar_lea.vmem %s244, 76
        %535 = vst.msk [vmem:[%s534] sm:$0x3] %vm414, %v532
        %536 = vrot.lane.b32.xlu0 %v411, 114
        %v537 = vpop.permute.xlu0 %536
        %s539 = scalar_lea.vmem %s244, 78
        %540 = vst.msk [vmem:[%s539] sm:$0x3] %vm414, %v537
        %s541 = scalar_lea.vmem %s244, 80
        %542 = vst.msk [vmem:[%s541 - $0x2] sm:$0xc] %vm453, %v411
        %s543 = scalar_lea.vmem %s244, 82
        %544 = vst.msk [vmem:[%s543 - $0x2] sm:$0xc] %vm453, %v507
        %s545 = scalar_lea.vmem %s244, 84
        %546 = vst.msk [vmem:[%s545 - $0x2] sm:$0xc] %vm453, %v512
        %s547 = scalar_lea.vmem %s244, 86
        %548 = vst.msk [vmem:[%s547 - $0x2] sm:$0xc] %vm453, %v517
        %s549 = scalar_lea.vmem %s244, 88
        %550 = vst.msk [vmem:[%s549 - $0x2] sm:$0xc] %vm453, %v522
        %s551 = scalar_lea.vmem %s244, 90
        %552 = vst.msk [vmem:[%s551 - $0x2] sm:$0xc] %vm453, %v527
        %s553 = scalar_lea.vmem %s244, 92
        %554 = vst.msk [vmem:[%s553 - $0x2] sm:$0xc] %vm453, %v532
        %s555 = scalar_lea.vmem %s244, 94
        %556 = vst.msk [vmem:[%s555 - $0x2] sm:$0xc] %vm453, %v537
        %s557 = scalar_lea.vmem %s244, 96
        %558 = vst.msk [vmem:[%s557 - $0x4] sm:$0x30] %vm470, %v411
        %s559 = scalar_lea.vmem %s244, 98
        %560 = vst.msk [vmem:[%s559 - $0x4] sm:$0x30] %vm470, %v507
        %s561 = scalar_lea.vmem %s244, 100
        %562 = vst.msk [vmem:[%s561 - $0x4] sm:$0x30] %vm470, %v512
        %s563 = scalar_lea.vmem %s244, 102
        %564 = vst.msk [vmem:[%s563 - $0x4] sm:$0x30] %vm470, %v517
        %s565 = scalar_lea.vmem %s244, 104
        %566 = vst.msk [vmem:[%s565 - $0x4] sm:$0x30] %vm470, %v522
        %s567 = scalar_lea.vmem %s244, 106
        %568 = vst.msk [vmem:[%s567 - $0x4] sm:$0x30] %vm470, %v527
        %s569 = scalar_lea.vmem %s244, 108
        %570 = vst.msk [vmem:[%s569 - $0x4] sm:$0x30] %vm470, %v532
        %s571 = scalar_lea.vmem %s244, 110
        %572 = vst.msk [vmem:[%s571 - $0x4] sm:$0x30] %vm470, %v537
        %s573 = scalar_lea.vmem %s244, 112
        %574 = vst.msk [vmem:[%s573 - $0x6] sm:$0xc0] %vm487, %v411
        %s575 = scalar_lea.vmem %s244, 114
        %576 = vst.msk [vmem:[%s575 - $0x6] sm:$0xc0] %vm487, %v507
        %s577 = scalar_lea.vmem %s244, 116
        %578 = vst.msk [vmem:[%s577 - $0x6] sm:$0xc0] %vm487, %v512
        %s579 = scalar_lea.vmem %s244, 118
        %580 = vst.msk [vmem:[%s579 - $0x6] sm:$0xc0] %vm487, %v517
        %s581 = scalar_lea.vmem %s244, 120
        %582 = vst.msk [vmem:[%s581 - $0x6] sm:$0xc0] %vm487, %v522
        %s583 = scalar_lea.vmem %s244, 122
        %584 = vst.msk [vmem:[%s583 - $0x6] sm:$0xc0] %vm487, %v527
        %s585 = scalar_lea.vmem %s244, 124
        %586 = vst.msk [vmem:[%s585 - $0x6] sm:$0xc0] %vm487, %v532
        %s587 = scalar_lea.vmem %s244, 126
        %588 = vst.msk [vmem:[%s587 - $0x6] sm:$0xc0] %vm487, %v537
        %p589 = scmp.lt.s32.totalorder %s22, 1
        %s590 = scalar_select %p589, %s22, 1
        %p591 = scmp.lt.s32.totalorder %s23, 0
        %s592 = scalar_select %p591, %s23, 0
        %s593 = smul.addr %s590, 64
        %s594 = sadd.s32 %s592, %s593
        %s595 = smul.addr %s594, 2
        %s596 = scalar_lea.vmem %s3, %s595
        // Predicated region
        $region45: #{tpu_custom_call.1} parent=31 // pred_check
          %p597 = pneg %p120
        $region46: #{tpu_custom_call.1} parent=31 // pred_check_branch
          %599 = sbr.rel (%p597) target = $region48
        $region47: #{tpu_custom_call.1} parent=31 // pred_region
          _
        $region48: #{tpu_custom_call.1} parent=31 // pred_fallthru
          _
      $region32: #{tpu_custom_call.1} parent=5 // pred_fallthru
        _
      %p600 = scmp.le.s32.totalorder 2, %s13
      // Predicated region
      $region49: #{tpu_custom_call.1} parent=5 // pred_check
        %p601 = pneg %p600
      $region50: #{tpu_custom_call.1} parent=5 // pred_check_branch
        %603 = sbr.rel (%p601) target = $region52
      $region51: #{tpu_custom_call.1} parent=5 // pred_region
        %s604 = ssub.s32 %s13, 2
        // Predicated region
        $region53: #{tpu_custom_call.1} parent=51 // pred_check
          %p605 = pneg %p126
        $region54: #{tpu_custom_call.1} parent=51 // pred_check_branch
          %607 = sbr.rel (%p605) target = $region56
        $region55: #{tpu_custom_call.1} parent=51 // pred_region
          %p608 = scmp.lt.s32.totalorder %s24, 1
          %s609 = scalar_select %p608, %s24, 1
          %p610 = scmp.lt.s32.totalorder %s25, 0
          %s611 = scalar_select %p610, %s25, 0
          %s612 = smul.addr %s609, 64
          %s613 = sadd.s32 %s611, %s612
          %s614 = smul.addr %s613, 2
          %s615 = scalar_lea.vmem %s3, %s614
        $region56: #{tpu_custom_call.1} parent=51 // pred_fallthru
          _
      $region52: #{tpu_custom_call.1} parent=5 // pred_fallthru
        _
    $region6: #{tpu_custom_call.1} parent=1 // loop_footer
      %s17 = sadd.s32 1, %s13
    $region7: #{tpu_custom_call.1} parent=1 // loop_footer_branch
      %12 = sbr.rel target = $region3
    $region8: #{tpu_custom_call.1} parent=1 // loop_exit
      _
    %616 = vsyncpa [#allocation3], 1
    %s617 = scalar_lea.sflag [#allocation3], 1
    %618 = vsyncpa %s617, 1
    %619 = vsyncpa [#allocation5], 1

</llo_original>
